<compile_context>
chip_gen: v5e
topology: v5e:2x2
jax: 0.10.0
libtpu: 0.0.40
codegen_flags: <defaults>
</compile_context>

<pallas_src>
import jax
import jax.numpy as jnp
from jax import lax
from jax.experimental import pallas as pl
from jax.experimental.pallas import tpu as pltpu


def lstm_fc_kernel(x_ref, wih_ref, whh_ref, b_ref, wfc_ref, bfc_ref,
                   out_ref, h_sc, c_sc, gx_sc, hs_sc):
    Bp, Hp = h_sc.shape
    Tc = hs_sc.shape[0] // Bp

    # h0 = c0 = 0 (PyTorch default), only at the very first chunk.
    @pl.when(pl.program_id(0) == 0)
    def _():
        h_sc[...] = jnp.zeros_like(h_sc)
        c_sc[...] = jnp.zeros_like(c_sc)

    # ---- Hoisted input projection: one (Tc*Bp, D) @ (D, 4Hp) MXU matmul. ----
    gx_sc[...] = (
        jnp.dot(x_ref[...], wih_ref[...], preferred_element_type=jnp.float32)
        + b_ref[...])                                    # (1,4Hp) bias broadcast

    # ---- Serial recurrence over the chunk; h/c live in vregs. ----
    def step(t, carry):
        h, c = carry                                     # (Bp, Hp) fp32
        row = pl.multiple_of(t * Bp, Bp)
        gates = gx_sc[pl.ds(row, Bp), :] + jnp.dot(
            h.astype(whh_ref.dtype), whh_ref[...],
            preferred_element_type=jnp.float32)          # (Bp, 4Hp)
        # Gate slices are 128-lane aligned because Hp % 128 == 0.
        i_g = jax.nn.sigmoid(gates[:, 0 * Hp:1 * Hp])
        f_g = jax.nn.sigmoid(gates[:, 1 * Hp:2 * Hp])
        g_g = jnp.tanh(gates[:, 2 * Hp:3 * Hp])
        o_g = jax.nn.sigmoid(gates[:, 3 * Hp:4 * Hp])
        c_new = f_g * c + i_g * g_g
        h_new = o_g * jnp.tanh(c_new)
        hs_sc[pl.ds(row, Bp), :] = h_new
        return h_new, c_new

    h_fin, c_fin = lax.fori_loop(0, Tc, step, (h_sc[...], c_sc[...]),
                                 unroll=True)
    h_sc[...] = h_fin
    c_sc[...] = c_fin

    # ---- Hoisted FC projection: one (Tc*Bp, Hp) @ (Hp, Vp) MXU matmul. ----
    logits = jnp.dot(hs_sc[...].astype(wfc_ref.dtype), wfc_ref[...],
                     preferred_element_type=jnp.float32) + bfc_ref[...]
    out_ref[...] = logits.astype(out_ref.dtype)          # lane-dense (Vp%128==0)


def asr_model_forward(x, params, *, t_chunk=16, mxu_dtype=jnp.float32):
    """x: (B, T, D) float32.  Returns (B, T, V) float32."""
    x = jnp.asarray(x, jnp.float32)
    B, T, D = x.shape
    w_ih = jnp.asarray(params["w_ih"], jnp.float32)      # (4H, D)
    w_hh = jnp.asarray(params["w_hh"], jnp.float32)      # (4H, H)
    b_ih = jnp.asarray(params["b_ih"], jnp.float32)      # (4H,)
    b_hh = jnp.asarray(params["b_hh"], jnp.float32)      # (4H,)
    w_fc = jnp.asarray(params["w_fc"], jnp.float32)      # (V, H)
    b_fc = jnp.asarray(params["b_fc"], jnp.float32)      # (V,)
    H = w_hh.shape[1]
    V = w_fc.shape[0]

    def rup(a, m):
        return -(-a // m) * m

    Hp = rup(H, 128)                 # lane-align gate slices / hidden features
    Vp = rup(V, 128)                 # lane-dense output stores
    Bp = rup(B, 8)                   # sublane-align the batch dim
    Tc = max(1, min(t_chunk, T))     # timesteps per grid step
    Tp = rup(T, Tc)
    n_chunks = Tp // Tc

    # ---- Parameter prep (pure glue, no per-step cost). --------------------
    def pad_gates(w):
        """(4H, ...) -> (4Hp, ...): zero-pad each of the 4 gate blocks to Hp rows."""
        w4 = w.reshape((4, H) + w.shape[1:])
        pad_width = [(0, 0), (0, Hp - H)] + [(0, 0)] * (w.ndim - 1)
        return jnp.pad(w4, pad_width).reshape((4 * Hp,) + w.shape[1:])

    w_ih_p = pad_gates(w_ih)                                       # (4Hp, D)
    w_hh_p = jnp.pad(pad_gates(w_hh), ((0, 0), (0, Hp - H)))       # (4Hp, Hp)
    b_gate = pad_gates(b_ih + b_hh).reshape(1, 4 * Hp)             # (1, 4Hp)
    w_fc_p = jnp.pad(w_fc, ((0, Vp - V), (0, Hp - H)))             # (Vp, Hp)
    b_fc_p = jnp.pad(b_fc, (0, Vp - V)).reshape(1, Vp)             # (1, Vp)

    wih_t = w_ih_p.T.astype(mxu_dtype)                             # (D, 4Hp)
    whh_t = w_hh_p.T.astype(mxu_dtype)                             # (Hp, 4Hp)
    wfc_t = w_fc_p.T.astype(mxu_dtype)                             # (Hp, Vp)

    # x: (B,T,D) -> pad -> time-major (Tp,Bp,D) -> dense 2D slab (Tp*Bp, D).
    x_p = jnp.pad(x, ((0, Bp - B), (0, Tp - T), (0, 0)))
    x_tm = jnp.transpose(x_p, (1, 0, 2)).reshape(Tp * Bp, D).astype(mxu_dtype)

    out2d = pl.pallas_call(
        lstm_fc_kernel,
        out_shape=jax.ShapeDtypeStruct((Tp * Bp, Vp), jnp.float32),
        grid_spec=pltpu.PrefetchScalarGridSpec(
            num_scalar_prefetch=0,
            grid=(n_chunks,),
            in_specs=[
                pl.BlockSpec((Tc * Bp, D), lambda c: (c, 0)),      # x chunk
                pl.BlockSpec((D, 4 * Hp), lambda c: (0, 0)),       # W_ih^T
                pl.BlockSpec((Hp, 4 * Hp), lambda c: (0, 0)),      # W_hh^T
                pl.BlockSpec((1, 4 * Hp), lambda c: (0, 0)),       # gate bias
                pl.BlockSpec((Hp, Vp), lambda c: (0, 0)),          # W_fc^T
                pl.BlockSpec((1, Vp), lambda c: (0, 0)),           # b_fc
            ],
            out_specs=pl.BlockSpec((Tc * Bp, Vp), lambda c: (c, 0)),
            scratch_shapes=[
                pltpu.VMEM((Bp, Hp), jnp.float32),                 # h carry
                pltpu.VMEM((Bp, Hp), jnp.float32),                 # c carry
                pltpu.VMEM((Tc * Bp, 4 * Hp), jnp.float32),        # hoisted x-gates
                pltpu.VMEM((Tc * Bp, Hp), jnp.float32),            # chunk hiddens
            ],
        ),
        compiler_params=pltpu.CompilerParams(
            dimension_semantics=("arbitrary",)),   # time chunks: true recurrence
    )(x_tm, wih_t, whh_t, b_gate, wfc_t, b_fc_p)

    # Undo padding / layout: (Tp*Bp, Vp) -> (B, T, V).
    out = out2d.reshape(Tp, Bp, Vp).transpose(1, 0, 2)[:B, :T, :V]
    return out


def init_params(key, input_dim, hidden_dim, vocab_size):
    """Deterministic init matching PyTorch shapes (uniform(-1/sqrt(H), 1/sqrt(H)))."""
    ks = jax.random.split(key, 6)
    s = 1.0 / jnp.sqrt(hidden_dim)
    u = lambda k, shape: jax.random.uniform(k, shape, jnp.float32, -s, s)
    return {
        "w_ih": u(ks[0], (4 * hidden_dim, input_dim)),
        "w_hh": u(ks[1], (4 * hidden_dim, hidden_dim)),
        "b_ih": u(ks[2], (4 * hidden_dim,)),
        "b_hh": u(ks[3], (4 * hidden_dim,)),
        "w_fc": u(ks[4], (vocab_size, hidden_dim)),
        "b_fc": u(ks[5], (vocab_size,)),
    }


def reference_forward(x, params):
    """Pure-JAX reference of the PyTorch forward (for correctness check)."""
    w_ih, w_hh = params["w_ih"], params["w_hh"]
    b = params["b_ih"] + params["b_hh"]
    w_fc, b_fc = params["w_fc"], params["b_fc"]
    H = w_hh.shape[1]
    B, T, D = x.shape

    def step(carry, x_t):
        h, c = carry
        gates = x_t @ w_ih.T + h @ w_hh.T + b
        i = jax.nn.sigmoid(gates[:, 0 * H:1 * H])
        f = jax.nn.sigmoid(gates[:, 1 * H:2 * H])
        g = jnp.tanh(gates[:, 2 * H:3 * H])
        o = jax.nn.sigmoid(gates[:, 3 * H:4 * H])
        c = f * c + i * g
        h = o * jnp.tanh(c)
        return (h, c), h

    h0 = jnp.zeros((B, H), jnp.float32)
    c0 = jnp.zeros((B, H), jnp.float32)
    _, hs = jax.lax.scan(step, (h0, c0), jnp.swapaxes(x, 0, 1))   # (T, B, H)
    hs = jnp.swapaxes(hs, 0, 1)                                    # (B, T, H)
    return hs @ w_fc.T + b_fc


if __name__ == "__main__":
    # Small shapes implied by the module: (batch, seq, input_dim) -> (batch, seq, vocab).
    # seq=10 with t_chunk=4 exercises both the cross-chunk h/c carry and the
    # time-padding path (Tp=12, 3 grid steps).
    batch, seq, input_dim, hidden_dim, vocab_size = 2, 10, 16, 32, 48

    key = jax.random.PRNGKey(0)
    k_x, k_p = jax.random.split(key)
    x = jax.random.normal(k_x, (batch, seq, input_dim), jnp.float32)
    params = init_params(k_p, input_dim, hidden_dim, vocab_size)

    out = asr_model_forward(x, params, t_chunk=4)
    out = jax.block_until_ready(out)

    ref = reference_forward(x, params)
    assert out.shape == (batch, seq, vocab_size)
    assert jnp.allclose(out, ref, atol=1e-4, rtol=1e-4), "mismatch vs reference"

    print("KERNEL_OK")
</pallas_src>

<mosaic_0001>
module attributes {stable_mosaic.version = 11 : i64} {
  func.func @lstm_fc_kernel(%arg0: i32, %arg1: memref<32x16xf32, #tpu.memory_space<vmem>>, %arg2: memref<16x512xf32, #tpu.memory_space<vmem>>, %arg3: memref<128x512xf32, #tpu.memory_space<vmem>>, %arg4: memref<1x512xf32, #tpu.memory_space<vmem>>, %arg5: memref<128x128xf32, #tpu.memory_space<vmem>>, %arg6: memref<1x128xf32, #tpu.memory_space<vmem>>, %arg7: memref<32x128xf32, #tpu.memory_space<vmem>>, %arg8: memref<8x128xf32, #tpu.memory_space<vmem>>, %arg9: memref<8x128xf32, #tpu.memory_space<vmem>>, %arg10: memref<32x512xf32, #tpu.memory_space<vmem>>, %arg11: memref<32x128xf32, #tpu.memory_space<vmem>>) attributes {dimension_semantics = [#tpu.dimension_semantics<arbitrary>], iteration_bounds = array<i64: 3>, scalar_prefetch = 0 : i64, scratch_operands = 4 : i64, tpu.core_type = #tpu.core_type<tc>, window_params = [{transform_indices = @transform_0, window_bounds = array<i64: 32, 16>}, {pipeline_mode = #tpu.pipeline_mode<synchronous>, transform_indices = @transform_1, window_bounds = array<i64: 16, 512>}, {pipeline_mode = #tpu.pipeline_mode<synchronous>, transform_indices = @transform_2, window_bounds = array<i64: 128, 512>}, {pipeline_mode = #tpu.pipeline_mode<synchronous>, transform_indices = @transform_3, window_bounds = array<i64: 1, 512>}, {pipeline_mode = #tpu.pipeline_mode<synchronous>, transform_indices = @transform_4, window_bounds = array<i64: 128, 128>}, {pipeline_mode = #tpu.pipeline_mode<synchronous>, transform_indices = @transform_5, window_bounds = array<i64: 1, 128>}, {transform_indices = @transform_6, window_bounds = array<i64: 32, 128>}]} {
    %c0_i32 = arith.constant 0 : i32
    %0 = arith.cmpi eq, %arg0, %c0_i32 : i32
    %1 = arith.extui %0 : i1 to i32
    %c0_i32_0 = arith.constant 0 : i32
    %2 = arith.cmpi ne, %1, %c0_i32_0 : i32
    scf.if %2 {
      %cst_61 = arith.constant 0.000000e+00 : f32
      %157 = vector.broadcast %cst_61 : f32 to vector<8x128xf32>
      %c0_62 = arith.constant 0 : index
      %c0_63 = arith.constant 0 : index
      %158 = vector.load %arg8[%c0_62, %c0_63] : memref<8x128xf32, #tpu.memory_space<vmem>>, vector<8x128xf32>
      tpu.vector_store %arg8[%c0_62, %c0_63], %157 {strides = array<i32>} : memref<8x128xf32, #tpu.memory_space<vmem>>, vector<8x128xf32>,
      %cst_64 = arith.constant 0.000000e+00 : f32
      %159 = vector.broadcast %cst_64 : f32 to vector<8x128xf32>
      %c0_65 = arith.constant 0 : index
      %c0_66 = arith.constant 0 : index
      %160 = vector.load %arg9[%c0_65, %c0_66] : memref<8x128xf32, #tpu.memory_space<vmem>>, vector<8x128xf32>
      tpu.vector_store %arg9[%c0_65, %c0_66], %159 {strides = array<i32>} : memref<8x128xf32, #tpu.memory_space<vmem>>, vector<8x128xf32>,
    } else {
    }
    %c0 = arith.constant 0 : index
    %c0_1 = arith.constant 0 : index
    %3 = vector.load %arg1[%c0, %c0_1] : memref<32x16xf32, #tpu.memory_space<vmem>>, vector<32x16xf32>
    %c0_2 = arith.constant 0 : index
    %c0_3 = arith.constant 0 : index
    %4 = vector.load %arg2[%c0_2, %c0_3] : memref<16x512xf32, #tpu.memory_space<vmem>>, vector<16x512xf32>
    %cst = arith.constant dense<0.000000e+00> : vector<32x512xf32>
    %5 = tpu.matmul %3, %4, %cst {dimension_numbers = #tpu.dot_dimension_numbers<[1], [0], [0], [1], [0, 0, 1, 1], [], []>} : vector<32x16xf32>, vector<16x512xf32>, vector<32x512xf32> -> vector<32x512xf32>
    %c0_4 = arith.constant 0 : index
    %c0_5 = arith.constant 0 : index
    %6 = vector.load %arg4[%c0_4, %c0_5] : memref<1x512xf32, #tpu.memory_space<vmem>>, vector<1x512xf32>
    %7 = vector.broadcast %6 : vector<1x512xf32> to vector<32x512xf32>
    %8 = arith.addf %5, %7 : vector<32x512xf32>
    %c0_6 = arith.constant 0 : index
    %c0_7 = arith.constant 0 : index
    %9 = vector.load %arg10[%c0_6, %c0_7] : memref<32x512xf32, #tpu.memory_space<vmem>>, vector<32x512xf32>
    tpu.vector_store %arg10[%c0_6, %c0_7], %8 {strides = array<i32>} : memref<32x512xf32, #tpu.memory_space<vmem>>, vector<32x512xf32>,
    %c0_8 = arith.constant 0 : index
    %c0_9 = arith.constant 0 : index
    %10 = vector.load %arg8[%c0_8, %c0_9] : memref<8x128xf32, #tpu.memory_space<vmem>>, vector<8x128xf32>
    %c0_10 = arith.constant 0 : index
    %c0_11 = arith.constant 0 : index
    %11 = vector.load %arg9[%c0_10, %c0_11] : memref<8x128xf32, #tpu.memory_space<vmem>>, vector<8x128xf32>
    %c0_i32_12 = arith.constant 0 : i32
    %c8_i32 = arith.constant 8 : i32
    %12 = arith.muli %c0_i32_12, %c8_i32 : i32
    %13 = tpu.assume_multiple %12, 8 : i32
    %14 = arith.index_cast %13 : i32 to index
    %c0_13 = arith.constant 0 : index
    %15 = vector.load %arg10[%14, %c0_13] : memref<32x512xf32, #tpu.memory_space<vmem>>, vector<8x512xf32>
    %c0_14 = arith.constant 0 : index
    %c0_15 = arith.constant 0 : index
    %16 = vector.load %arg3[%c0_14, %c0_15] : memref<128x512xf32, #tpu.memory_space<vmem>>, vector<128x512xf32>
    %cst_16 = arith.constant dense<0.000000e+00> : vector<8x512xf32>
    %17 = tpu.matmul %10, %16, %cst_16 {dimension_numbers = #tpu.dot_dimension_numbers<[1], [0], [0], [1], [0, 0, 1, 1], [], []>} : vector<8x128xf32>, vector<128x512xf32>, vector<8x512xf32> -> vector<8x512xf32>
    %18 = arith.addf %15, %17 : vector<8x512xf32>
    %19 = vector.extract_strided_slice %18 {offsets = [0, 0], sizes = [8, 128], strides = [1, 1]} : vector<8x512xf32> to vector<8x128xf32>
    %20 = arith.negf %19 : vector<8x128xf32>
    %21 = math.exp %20 : vector<8x128xf32>
    %cst_17 = arith.constant 1.000000e+00 : f32
    %22 = vector.broadcast %cst_17 : f32 to vector<8x128xf32>
    %23 = arith.addf %22, %21 : vector<8x128xf32>
    %24 = arith.divf %22, %23 : vector<8x128xf32>
    %25 = vector.extract_strided_slice %18 {offsets = [0, 128], sizes = [8, 128], strides = [1, 1]} : vector<8x512xf32> to vector<8x128xf32>
    %26 = arith.negf %25 : vector<8x128xf32>
    %27 = math.exp %26 : vector<8x128xf32>
    %cst_18 = arith.constant 1.000000e+00 : f32
    %28 = vector.broadcast %cst_18 : f32 to vector<8x128xf32>
    %29 = arith.addf %28, %27 : vector<8x128xf32>
    %30 = arith.divf %28, %29 : vector<8x128xf32>
    %31 = vector.extract_strided_slice %18 {offsets = [0, 256], sizes = [8, 128], strides = [1, 1]} : vector<8x512xf32> to vector<8x128xf32>
    %32 = math.tanh %31 : vector<8x128xf32>
    %33 = vector.extract_strided_slice %18 {offsets = [0, 384], sizes = [8, 128], strides = [1, 1]} : vector<8x512xf32> to vector<8x128xf32>
    %34 = arith.negf %33 : vector<8x128xf32>
    %35 = math.exp %34 : vector<8x128xf32>
    %cst_19 = arith.constant 1.000000e+00 : f32
    %36 = vector.broadcast %cst_19 : f32 to vector<8x128xf32>
    %37 = arith.addf %36, %35 : vector<8x128xf32>
    %38 = arith.divf %36, %37 : vector<8x128xf32>
    %39 = arith.mulf %30, %11 : vector<8x128xf32>
    %40 = arith.mulf %24, %32 : vector<8x128xf32>
    %41 = arith.addf %39, %40 : vector<8x128xf32>
    %42 = math.tanh %41 : vector<8x128xf32>
    %43 = arith.mulf %38, %42 : vector<8x128xf32>
    %44 = arith.index_cast %13 : i32 to index
    %c0_20 = arith.constant 0 : index
    %45 = vector.load %arg11[%44, %c0_20] : memref<32x128xf32, #tpu.memory_space<vmem>>, vector<8x128xf32>
    tpu.vector_store %arg11[%44, %c0_20], %43 {strides = array<i32>} : memref<32x128xf32, #tpu.memory_space<vmem>>, vector<8x128xf32>,
    %c1_i32 = arith.constant 1 : i32
    %c8_i32_21 = arith.constant 8 : i32
    %46 = arith.muli %c1_i32, %c8_i32_21 : i32
    %47 = tpu.assume_multiple %46, 8 : i32
    %48 = arith.index_cast %47 : i32 to index
    %c0_22 = arith.constant 0 : index
    %49 = vector.load %arg10[%48, %c0_22] : memref<32x512xf32, #tpu.memory_space<vmem>>, vector<8x512xf32>
    %c0_23 = arith.constant 0 : index
    %c0_24 = arith.constant 0 : index
    %50 = vector.load %arg3[%c0_23, %c0_24] : memref<128x512xf32, #tpu.memory_space<vmem>>, vector<128x512xf32>
    %cst_25 = arith.constant dense<0.000000e+00> : vector<8x512xf32>
    %51 = tpu.matmul %43, %50, %cst_25 {dimension_numbers = #tpu.dot_dimension_numbers<[1], [0], [0], [1], [0, 0, 1, 1], [], []>} : vector<8x128xf32>, vector<128x512xf32>, vector<8x512xf32> -> vector<8x512xf32>
    %52 = arith.addf %49, %51 : vector<8x512xf32>
    %53 = vector.extract_strided_slice %52 {offsets = [0, 0], sizes = [8, 128], strides = [1, 1]} : vector<8x512xf32> to vector<8x128xf32>
    %54 = arith.negf %53 : vector<8x128xf32>
    %55 = math.exp %54 : vector<8x128xf32>
    %cst_26 = arith.constant 1.000000e+00 : f32
    %56 = vector.broadcast %cst_26 : f32 to vector<8x128xf32>
    %57 = arith.addf %56, %55 : vector<8x128xf32>
    %58 = arith.divf %56, %57 : vector<8x128xf32>
    %59 = vector.extract_strided_slice %52 {offsets = [0, 128], sizes = [8, 128], strides = [1, 1]} : vector<8x512xf32> to vector<8x128xf32>
    %60 = arith.negf %59 : vector<8x128xf32>
    %61 = math.exp %60 : vector<8x128xf32>
    %cst_27 = arith.constant 1.000000e+00 : f32
    %62 = vector.broadcast %cst_27 : f32 to vector<8x128xf32>
    %63 = arith.addf %62, %61 : vector<8x128xf32>
    %64 = arith.divf %62, %63 : vector<8x128xf32>
    %65 = vector.extract_strided_slice %52 {offsets = [0, 256], sizes = [8, 128], strides = [1, 1]} : vector<8x512xf32> to vector<8x128xf32>
    %66 = math.tanh %65 : vector<8x128xf32>
    %67 = vector.extract_strided_slice %52 {offsets = [0, 384], sizes = [8, 128], strides = [1, 1]} : vector<8x512xf32> to vector<8x128xf32>
    %68 = arith.negf %67 : vector<8x128xf32>
    %69 = math.exp %68 : vector<8x128xf32>
    %cst_28 = arith.constant 1.000000e+00 : f32
    %70 = vector.broadcast %cst_28 : f32 to vector<8x128xf32>
    %71 = arith.addf %70, %69 : vector<8x128xf32>
    %72 = arith.divf %70, %71 : vector<8x128xf32>
    %73 = arith.mulf %64, %41 : vector<8x128xf32>
    %74 = arith.mulf %58, %66 : vector<8x128xf32>
    %75 = arith.addf %73, %74 : vector<8x128xf32>
    %76 = math.tanh %75 : vector<8x128xf32>
    %77 = arith.mulf %72, %76 : vector<8x128xf32>
    %78 = arith.index_cast %47 : i32 to index
    %c0_29 = arith.constant 0 : index
    %79 = vector.load %arg11[%78, %c0_29] : memref<32x128xf32, #tpu.memory_space<vmem>>, vector<8x128xf32>
    tpu.vector_store %arg11[%78, %c0_29], %77 {strides = array<i32>} : memref<32x128xf32, #tpu.memory_space<vmem>>, vector<8x128xf32>,
    %c2_i32 = arith.constant 2 : i32
    %c8_i32_30 = arith.constant 8 : i32
    %80 = arith.muli %c2_i32, %c8_i32_30 : i32
    %81 = tpu.assume_multiple %80, 8 : i32
    %82 = arith.index_cast %81 : i32 to index
    %c0_31 = arith.constant 0 : index
    %83 = vector.load %arg10[%82, %c0_31] : memref<32x512xf32, #tpu.memory_space<vmem>>, vector<8x512xf32>
    %c0_32 = arith.constant 0 : index
    %c0_33 = arith.constant 0 : index
    %84 = vector.load %arg3[%c0_32, %c0_33] : memref<128x512xf32, #tpu.memory_space<vmem>>, vector<128x512xf32>
    %cst_34 = arith.constant dense<0.000000e+00> : vector<8x512xf32>
    %85 = tpu.matmul %77, %84, %cst_34 {dimension_numbers = #tpu.dot_dimension_numbers<[1], [0], [0], [1], [0, 0, 1, 1], [], []>} : vector<8x128xf32>, vector<128x512xf32>, vector<8x512xf32> -> vector<8x512xf32>
    %86 = arith.addf %83, %85 : vector<8x512xf32>
    %87 = vector.extract_strided_slice %86 {offsets = [0, 0], sizes = [8, 128], strides = [1, 1]} : vector<8x512xf32> to vector<8x128xf32>
    %88 = arith.negf %87 : vector<8x128xf32>
    %89 = math.exp %88 : vector<8x128xf32>
    %cst_35 = arith.constant 1.000000e+00 : f32
    %90 = vector.broadcast %cst_35 : f32 to vector<8x128xf32>
    %91 = arith.addf %90, %89 : vector<8x128xf32>
    %92 = arith.divf %90, %91 : vector<8x128xf32>
    %93 = vector.extract_strided_slice %86 {offsets = [0, 128], sizes = [8, 128], strides = [1, 1]} : vector<8x512xf32> to vector<8x128xf32>
    %94 = arith.negf %93 : vector<8x128xf32>
    %95 = math.exp %94 : vector<8x128xf32>
    %cst_36 = arith.constant 1.000000e+00 : f32
    %96 = vector.broadcast %cst_36 : f32 to vector<8x128xf32>
    %97 = arith.addf %96, %95 : vector<8x128xf32>
    %98 = arith.divf %96, %97 : vector<8x128xf32>
    %99 = vector.extract_strided_slice %86 {offsets = [0, 256], sizes = [8, 128], strides = [1, 1]} : vector<8x512xf32> to vector<8x128xf32>
    %100 = math.tanh %99 : vector<8x128xf32>
    %101 = vector.extract_strided_slice %86 {offsets = [0, 384], sizes = [8, 128], strides = [1, 1]} : vector<8x512xf32> to vector<8x128xf32>
    %102 = arith.negf %101 : vector<8x128xf32>
    %103 = math.exp %102 : vector<8x128xf32>
    %cst_37 = arith.constant 1.000000e+00 : f32
    %104 = vector.broadcast %cst_37 : f32 to vector<8x128xf32>
    %105 = arith.addf %104, %103 : vector<8x128xf32>
    %106 = arith.divf %104, %105 : vector<8x128xf32>
    %107 = arith.mulf %98, %75 : vector<8x128xf32>
    %108 = arith.mulf %92, %100 : vector<8x128xf32>
    %109 = arith.addf %107, %108 : vector<8x128xf32>
    %110 = math.tanh %109 : vector<8x128xf32>
    %111 = arith.mulf %106, %110 : vector<8x128xf32>
    %112 = arith.index_cast %81 : i32 to index
    %c0_38 = arith.constant 0 : index
    %113 = vector.load %arg11[%112, %c0_38] : memref<32x128xf32, #tpu.memory_space<vmem>>, vector<8x128xf32>
    tpu.vector_store %arg11[%112, %c0_38], %111 {strides = array<i32>} : memref<32x128xf32, #tpu.memory_space<vmem>>, vector<8x128xf32>,
    %c3_i32 = arith.constant 3 : i32
    %c8_i32_39 = arith.constant 8 : i32
    %114 = arith.muli %c3_i32, %c8_i32_39 : i32
    %115 = tpu.assume_multiple %114, 8 : i32
    %116 = arith.index_cast %115 : i32 to index
    %c0_40 = arith.constant 0 : index
    %117 = vector.load %arg10[%116, %c0_40] : memref<32x512xf32, #tpu.memory_space<vmem>>, vector<8x512xf32>
    %c0_41 = arith.constant 0 : index
    %c0_42 = arith.constant 0 : index
    %118 = vector.load %arg3[%c0_41, %c0_42] : memref<128x512xf32, #tpu.memory_space<vmem>>, vector<128x512xf32>
    %cst_43 = arith.constant dense<0.000000e+00> : vector<8x512xf32>
    %119 = tpu.matmul %111, %118, %cst_43 {dimension_numbers = #tpu.dot_dimension_numbers<[1], [0], [0], [1], [0, 0, 1, 1], [], []>} : vector<8x128xf32>, vector<128x512xf32>, vector<8x512xf32> -> vector<8x512xf32>
    %120 = arith.addf %117, %119 : vector<8x512xf32>
    %121 = vector.extract_strided_slice %120 {offsets = [0, 0], sizes = [8, 128], strides = [1, 1]} : vector<8x512xf32> to vector<8x128xf32>
    %122 = arith.negf %121 : vector<8x128xf32>
    %123 = math.exp %122 : vector<8x128xf32>
    %cst_44 = arith.constant 1.000000e+00 : f32
    %124 = vector.broadcast %cst_44 : f32 to vector<8x128xf32>
    %125 = arith.addf %124, %123 : vector<8x128xf32>
    %126 = arith.divf %124, %125 : vector<8x128xf32>
    %127 = vector.extract_strided_slice %120 {offsets = [0, 128], sizes = [8, 128], strides = [1, 1]} : vector<8x512xf32> to vector<8x128xf32>
    %128 = arith.negf %127 : vector<8x128xf32>
    %129 = math.exp %128 : vector<8x128xf32>
    %cst_45 = arith.constant 1.000000e+00 : f32
    %130 = vector.broadcast %cst_45 : f32 to vector<8x128xf32>
    %131 = arith.addf %130, %129 : vector<8x128xf32>
    %132 = arith.divf %130, %131 : vector<8x128xf32>
    %133 = vector.extract_strided_slice %120 {offsets = [0, 256], sizes = [8, 128], strides = [1, 1]} : vector<8x512xf32> to vector<8x128xf32>
    %134 = math.tanh %133 : vector<8x128xf32>
    %135 = vector.extract_strided_slice %120 {offsets = [0, 384], sizes = [8, 128], strides = [1, 1]} : vector<8x512xf32> to vector<8x128xf32>
    %136 = arith.negf %135 : vector<8x128xf32>
    %137 = math.exp %136 : vector<8x128xf32>
    %cst_46 = arith.constant 1.000000e+00 : f32
    %138 = vector.broadcast %cst_46 : f32 to vector<8x128xf32>
    %139 = arith.addf %138, %137 : vector<8x128xf32>
    %140 = arith.divf %138, %139 : vector<8x128xf32>
    %141 = arith.mulf %132, %109 : vector<8x128xf32>
    %142 = arith.mulf %126, %134 : vector<8x128xf32>
    %143 = arith.addf %141, %142 : vector<8x128xf32>
    %144 = math.tanh %143 : vector<8x128xf32>
    %145 = arith.mulf %140, %144 : vector<8x128xf32>
    %146 = arith.index_cast %115 : i32 to index
    %c0_47 = arith.constant 0 : index
    %147 = vector.load %arg11[%146, %c0_47] : memref<32x128xf32, #tpu.memory_space<vmem>>, vector<8x128xf32>
    tpu.vector_store %arg11[%146, %c0_47], %145 {strides = array<i32>} : memref<32x128xf32, #tpu.memory_space<vmem>>, vector<8x128xf32>,
    %c4_i32 = arith.constant 4 : i32
    %c0_48 = arith.constant 0 : index
    %c0_49 = arith.constant 0 : index
    %148 = vector.load %arg8[%c0_48, %c0_49] : memref<8x128xf32, #tpu.memory_space<vmem>>, vector<8x128xf32>
    tpu.vector_store %arg8[%c0_48, %c0_49], %145 {strides = array<i32>} : memref<8x128xf32, #tpu.memory_space<vmem>>, vector<8x128xf32>,
    %c0_50 = arith.constant 0 : index
    %c0_51 = arith.constant 0 : index
    %149 = vector.load %arg9[%c0_50, %c0_51] : memref<8x128xf32, #tpu.memory_space<vmem>>, vector<8x128xf32>
    tpu.vector_store %arg9[%c0_50, %c0_51], %143 {strides = array<i32>} : memref<8x128xf32, #tpu.memory_space<vmem>>, vector<8x128xf32>,
    %c0_52 = arith.constant 0 : index
    %c0_53 = arith.constant 0 : index
    %150 = vector.load %arg11[%c0_52, %c0_53] : memref<32x128xf32, #tpu.memory_space<vmem>>, vector<32x128xf32>
    %c0_54 = arith.constant 0 : index
    %c0_55 = arith.constant 0 : index
    %151 = vector.load %arg5[%c0_54, %c0_55] : memref<128x128xf32, #tpu.memory_space<vmem>>, vector<128x128xf32>
    %cst_56 = arith.constant dense<0.000000e+00> : vector<32x128xf32>
    %152 = tpu.matmul %150, %151, %cst_56 {dimension_numbers = #tpu.dot_dimension_numbers<[1], [0], [0], [1], [0, 0, 1, 1], [], []>} : vector<32x128xf32>, vector<128x128xf32>, vector<32x128xf32> -> vector<32x128xf32>
    %c0_57 = arith.constant 0 : index
    %c0_58 = arith.constant 0 : index
    %153 = vector.load %arg6[%c0_57, %c0_58] : memref<1x128xf32, #tpu.memory_space<vmem>>, vector<1x128xf32>
    %154 = vector.broadcast %153 : vector<1x128xf32> to vector<32x128xf32>
    %155 = arith.addf %152, %154 : vector<32x128xf32>
    %c0_59 = arith.constant 0 : index
    %c0_60 = arith.constant 0 : index
    %156 = vector.load %arg7[%c0_59, %c0_60] : memref<32x128xf32, #tpu.memory_space<vmem>>, vector<32x128xf32>
    tpu.vector_store %arg7[%c0_59, %c0_60], %155 {strides = array<i32>} : memref<32x128xf32, #tpu.memory_space<vmem>>, vector<32x128xf32>,
    return
  }
  func.func @transform_0(%arg0: i32) -> (i32, i32) {
    %c0_i32 = arith.constant 0 : i32
    %c0_i32_0 = arith.constant 0 : i32
    return %arg0, %c0_i32 : i32, i32
  }
  func.func @transform_1(%arg0: i32) -> (i32, i32) {
    %c0_i32 = arith.constant 0 : i32
    %c0_i32_0 = arith.constant 0 : i32
    %c0_i32_1 = arith.constant 0 : i32
    return %c0_i32, %c0_i32_0 : i32, i32
  }
  func.func @transform_2(%arg0: i32) -> (i32, i32) {
    %c0_i32 = arith.constant 0 : i32
    %c0_i32_0 = arith.constant 0 : i32
    %c0_i32_1 = arith.constant 0 : i32
    return %c0_i32, %c0_i32_0 : i32, i32
  }
  func.func @transform_3(%arg0: i32) -> (i32, i32) {
    %c0_i32 = arith.constant 0 : i32
    %c0_i32_0 = arith.constant 0 : i32
    %c0_i32_1 = arith.constant 0 : i32
    return %c0_i32, %c0_i32_0 : i32, i32
  }
  func.func @transform_4(%arg0: i32) -> (i32, i32) {
    %c0_i32 = arith.constant 0 : i32
    %c0_i32_0 = arith.constant 0 : i32
    %c0_i32_1 = arith.constant 0 : i32
    return %c0_i32, %c0_i32_0 : i32, i32
  }
  func.func @transform_5(%arg0: i32) -> (i32, i32) {
    %c0_i32 = arith.constant 0 : i32
    %c0_i32_0 = arith.constant 0 : i32
    %c0_i32_1 = arith.constant 0 : i32
    return %c0_i32, %c0_i32_0 : i32, i32
  }
  func.func @transform_6(%arg0: i32) -> (i32, i32) {
    %c0_i32 = arith.constant 0 : i32
    %c0_i32_0 = arith.constant 0 : i32
    return %arg0, %c0_i32 : i32, i32
  }
}

</mosaic_0001>

<llo_original>
// kernel: tpu_custom_call.1
$region0: #{tpu_custom_call.1}
  #allocation0 [shape = 'u32[]', space=smem, size = 0x4, offset = 0x4, fixed_abs, tag = 'smem constant byte address 0x4 - core index']
  #allocation1 [shape = 'u32[72,128]{1,0:T(1,128)}', space=vmem, size = 0x9000, scoped, tag = 'internal scratch']
  #allocation2 [shape = 'f32[8,128]{1,0:T(8,128)}', space=vmem, size = 0x1000, scoped, tag = 'scratch operand']
  #allocation3 [shape = 'f32[8,128]{1,0:T(8,128)}', space=vmem, size = 0x1000, scoped, tag = 'scratch operand']
  #allocation4 [shape = 'f32[32,512]{1,0:T(8,128)}', space=vmem, size = 0x10000, scoped, tag = 'scratch operand']
  #allocation5 [shape = 'f32[32,128]{1,0:T(8,128)}', space=vmem, size = 0x4000, scoped, tag = 'scratch operand']
  %s0 = inlined_call_operand.vmem [shape: f32[96,16], index: 0, kind: input, shape index: {}]
  %s1 = inlined_call_operand.vmem [shape: f32[16,512], index: 1, kind: input, shape index: {}]
  %s2 = inlined_call_operand.hbm [shape: f32[128,512], index: 2, kind: input, shape index: {}]
  %s3 = inlined_call_operand.vmem [shape: f32[1,512], index: 3, kind: input, shape index: {}]
  %s4 = inlined_call_operand.hbm [shape: f32[128,128], index: 4, kind: input, shape index: {}]
  %s5 = inlined_call_operand.vmem [shape: f32[1,128], index: 5, kind: input, shape index: {}]
  %s6 = inlined_call_operand.hbm [shape: f32[96,128], index: 6, kind: output, shape index: {}]
  %s7 = sld [smem:[#allocation0]]
  $region69: #{tpu_custom_call.1} parent=0
    _
  %s9 = ssub.s32 1, %s7
  %s10 = scalar_select 0, %s9, %s7
  $region1: #{tpu_custom_call.1} parent=0
    #allocation6 [shape = 'u8[262144]{0}', space=vmem, size = 0x40000, scoped, tag = 'input window, operand 2, single buffered']
    #allocation7 [shape = 's32[2]{0}', space=sflag, size = 0x8, scoped, tag = 'scoped memory for tpu_custom_call.1']
    #allocation8 [shape = 's32[2]{0}', space=sflag, size = 0x8, scoped, tag = 'scoped memory for tpu_custom_call.1']
    #allocation9 [shape = 'u8[65536]{0}', space=vmem, size = 0x10000, scoped, tag = 'input window, operand 4, single buffered']
    #allocation10 [shape = 's32[1]{0}', space=sflag, size = 0x4, scoped, tag = 'scoped memory for tpu_custom_call.1']
    #allocation11 [shape = 'u8[32768]{0}', space=vmem, size = 0x8000, scoped, tag = 'output window, operand 0']
    %11 = vsyncpa [#allocation7], 0
    %12 = vsyncpa [#allocation10], 0
    %13 = vsyncpa [#allocation8], 0
    %s14 = scalar_lea.sflag [#allocation8], 1
    %15 = vsyncpa %s14, 0
    loop: start=0, step=1, limit=5
    $region2: #{tpu_custom_call.1} parent=1 // loop_pre_header
      _
    $region3: #{tpu_custom_call.1} parent=1 // loop_header
      %s17 = sphi 0, %s21
      %p18 = scmp.ge.s32.totalorder %s17, 5
      %s27 = sphi 0, %s29
      %s30 = sphi 0, %s27
      %s31 = sphi 0, %s30
      %s47 = sphi 0, %s31
      %s51 = sphi 0, %s51
      %s53 = sphi 0, %s51
      %s54 = sphi 0, %s53
      %s68 = sphi 0, %s54
      %s72 = sphi 0, %s72
      %s74 = sphi 0, %s72
      %s75 = sphi 0, %s74
      %s89 = sphi 0, %s75
      %s93 = sphi 0, %s93
      %s95 = sphi 0, %s93
      %s96 = sphi 0, %s95
      %s110 = sphi 0, %s96
      %s114 = sphi 0, %s114
      %s116 = sphi 0, %s114
      %s117 = sphi 0, %s116
      %s131 = sphi 0, %s117
      %s135 = sphi 0, %s135
      %s137 = sphi 0, %s135
      %s138 = sphi 0, %s137
      %s152 = sphi 0, %s138
      %s158 = sphi 0, %s160
      %s161 = sphi 0, %s158
      %s162 = sphi 0, %s161
      %s178 = sphi 0, %s162
    $region4: #{tpu_custom_call.1} parent=1 // loop_header_branch
      %20 = sbr.rel (%p18) target = $region8
    $region5: #{tpu_custom_call.1} parent=1 // loop_body
      %s22 = ssub.s32 %s17, 1
      %s23 = ssub.s32 %s17, 2
      %s24 = sadd.s32 %s17, 1
      %s25 = ssub.s32 %s17, %s24
      %p26 = scmp.eq.s32.totalorder %s25, 0
      %s28 = sadd.s32 %s27, 1
      %s29 = scalar_select %p26, %s27, %s28
      %p32 = pneg %p26
      %p33 = scmp.eq.s32.totalorder %s17, 2
      %p34 = por %p32, %p33
      %p35 = scmp.ne.s32.totalorder %s27, %s30
      %p36 = scmp.eq.s32.totalorder %s17, 0
      %p37 = por %p35, %p36
      %p38 = scmp.ne.s32.totalorder %s27, %s30
      %p39 = scmp.eq.s32.totalorder %s22, 2
      %p40 = por %p38, %p39
      %p41 = scmp.ne.s32.totalorder %s30, %s31
      %p42 = scmp.eq.s32.totalorder %s22, 0
      %p43 = por %p41, %p42
      %p44 = scmp.ne.s32.totalorder %s30, %s31
      %p45 = scmp.eq.s32.totalorder %s23, 2
      %p46 = por %p44, %p45
      %p48 = scmp.ne.s32.totalorder %s31, %s47
      %p49 = scmp.eq.s32.totalorder %s23, 0
      %p50 = por %p48, %p49
      %s52 = sadd.s32 %s51, 1
      %p55 = scmp.eq.s32.totalorder %s17, 2
      %p56 = scmp.ne.s32.totalorder %s51, %s53
      %p57 = scmp.eq.s32.totalorder %s17, 0
      %p58 = por %p56, %p57
      %p59 = scmp.ne.s32.totalorder %s51, %s53
      %p60 = scmp.eq.s32.totalorder %s22, 2
      %p61 = por %p59, %p60
      %p62 = scmp.ne.s32.totalorder %s53, %s54
      %p63 = scmp.eq.s32.totalorder %s22, 0
      %p64 = por %p62, %p63
      %p65 = scmp.ne.s32.totalorder %s53, %s54
      %p66 = scmp.eq.s32.totalorder %s23, 2
      %p67 = por %p65, %p66
      %p69 = scmp.ne.s32.totalorder %s54, %s68
      %p70 = scmp.eq.s32.totalorder %s23, 0
      %p71 = por %p69, %p70
      %s73 = sadd.s32 %s72, 1
      %p76 = scmp.eq.s32.totalorder %s17, 2
      %p77 = scmp.ne.s32.totalorder %s72, %s74
      %p78 = scmp.eq.s32.totalorder %s17, 0
      %p79 = por %p77, %p78
      %p80 = scmp.ne.s32.totalorder %s72, %s74
      %p81 = scmp.eq.s32.totalorder %s22, 2
      %p82 = por %p80, %p81
      %p83 = scmp.ne.s32.totalorder %s74, %s75
      %p84 = scmp.eq.s32.totalorder %s22, 0
      %p85 = por %p83, %p84
      %p86 = scmp.ne.s32.totalorder %s74, %s75
      %p87 = scmp.eq.s32.totalorder %s23, 2
      %p88 = por %p86, %p87
      %p90 = scmp.ne.s32.totalorder %s75, %s89
      %p91 = scmp.eq.s32.totalorder %s23, 0
      %p92 = por %p90, %p91
      %s94 = sadd.s32 %s93, 1
      %p97 = scmp.eq.s32.totalorder %s17, 2
      %p98 = scmp.ne.s32.totalorder %s93, %s95
      %p99 = scmp.eq.s32.totalorder %s17, 0
      %p100 = por %p98, %p99
      %p101 = scmp.ne.s32.totalorder %s93, %s95
      %p102 = scmp.eq.s32.totalorder %s22, 2
      %p103 = por %p101, %p102
      %p104 = scmp.ne.s32.totalorder %s95, %s96
      %p105 = scmp.eq.s32.totalorder %s22, 0
      %p106 = por %p104, %p105
      %p107 = scmp.ne.s32.totalorder %s95, %s96
      %p108 = scmp.eq.s32.totalorder %s23, 2
      %p109 = por %p107, %p108
      %p111 = scmp.ne.s32.totalorder %s96, %s110
      %p112 = scmp.eq.s32.totalorder %s23, 0
      %p113 = por %p111, %p112
      %s115 = sadd.s32 %s114, 1
      %p118 = scmp.eq.s32.totalorder %s17, 2
      %p119 = scmp.ne.s32.totalorder %s114, %s116
      %p120 = scmp.eq.s32.totalorder %s17, 0
      %p121 = por %p119, %p120
      %p122 = scmp.ne.s32.totalorder %s114, %s116
      %p123 = scmp.eq.s32.totalorder %s22, 2
      %p124 = por %p122, %p123
      %p125 = scmp.ne.s32.totalorder %s116, %s117
      %p126 = scmp.eq.s32.totalorder %s22, 0
      %p127 = por %p125, %p126
      %p128 = scmp.ne.s32.totalorder %s116, %s117
      %p129 = scmp.eq.s32.totalorder %s23, 2
      %p130 = por %p128, %p129
      %p132 = scmp.ne.s32.totalorder %s117, %s131
      %p133 = scmp.eq.s32.totalorder %s23, 0
      %p134 = por %p132, %p133
      %s136 = sadd.s32 %s135, 1
      %p139 = scmp.eq.s32.totalorder %s17, 2
      %p140 = scmp.ne.s32.totalorder %s135, %s137
      %p141 = scmp.eq.s32.totalorder %s17, 0
      %p142 = por %p140, %p141
      %p143 = scmp.ne.s32.totalorder %s135, %s137
      %p144 = scmp.eq.s32.totalorder %s22, 2
      %p145 = por %p143, %p144
      %p146 = scmp.ne.s32.totalorder %s137, %s138
      %p147 = scmp.eq.s32.totalorder %s22, 0
      %p148 = por %p146, %p147
      %p149 = scmp.ne.s32.totalorder %s137, %s138
      %p150 = scmp.eq.s32.totalorder %s23, 2
      %p151 = por %p149, %p150
      %p153 = scmp.ne.s32.totalorder %s138, %s152
      %p154 = scmp.eq.s32.totalorder %s23, 0
      %p155 = por %p153, %p154
      %s156 = ssub.s32 %s17, %s24
      %p157 = scmp.eq.s32.totalorder %s156, 0
      %s159 = sadd.s32 %s158, 1
      %s160 = scalar_select %p157, %s158, %s159
      %p163 = pneg %p157
      %p164 = scmp.eq.s32.totalorder %s17, 2
      %p165 = por %p163, %p164
      %p166 = scmp.ne.s32.totalorder %s158, %s161
      %p167 = scmp.eq.s32.totalorder %s17, 0
      %p168 = por %p166, %p167
      %p169 = scmp.ne.s32.totalorder %s158, %s161
      %p170 = scmp.eq.s32.totalorder %s22, 2
      %p171 = por %p169, %p170
      %p172 = scmp.ne.s32.totalorder %s161, %s162
      %p173 = scmp.eq.s32.totalorder %s22, 0
      %p174 = por %p172, %p173
      %p175 = scmp.ne.s32.totalorder %s161, %s162
      %p176 = scmp.eq.s32.totalorder %s23, 2
      %p177 = por %p175, %p176
      %p179 = scmp.ne.s32.totalorder %s162, %s178
      %p180 = scmp.eq.s32.totalorder %s23, 0
      %p181 = por %p179, %p180
      %p182 = scmp.le.s32.totalorder 1, %s17
      %p183 = scmp.lt.s32.totalorder %s17, 4
      %p184 = pnand %p182, %p183
      %p185 = pneg %p184
      // Predicated region
      $region9: #{tpu_custom_call.1} parent=5 // pred_check
        _
      $region10: #{tpu_custom_call.1} parent=5 // pred_check_branch
        %187 = sbr.rel (%p184) target = $region12
      $region11: #{tpu_custom_call.1} parent=5 // pred_region
        %s188 = ssub.s32 %s17, 1
        // Predicated region
        $region13: #{tpu_custom_call.1} parent=11 // pred_check
          %p189 = pneg %p64
        $region14: #{tpu_custom_call.1} parent=11 // pred_check_branch
          %191 = sbr.rel (%p189) target = $region16
        $region15: #{tpu_custom_call.1} parent=11 // pred_region
          _
        $region16: #{tpu_custom_call.1} parent=11 // pred_fallthru
          _
        // Predicated region
        $region17: #{tpu_custom_call.1} parent=11 // pred_check
          %p192 = pneg %p85
        $region18: #{tpu_custom_call.1} parent=11 // pred_check_branch
          %194 = sbr.rel (%p192) target = $region20
        $region19: #{tpu_custom_call.1} parent=11 // pred_region
          %196 = vsyncadd [#allocation7], 0
          %s197 = sshll.u32 %s2, 4
          %s198 = int_to_ptr.hbm [resolvable:$true] %s197
          %s199 = sshll.u32 [#allocation6], 4
          %s200 = int_to_ptr.vmem [resolvable:$true] %s199
          %205 = dma.hbm_to_vmem [thread:$0]  %s198, 8192, %s200, [#allocation7], 512, 512, 32
        $region20: #{tpu_custom_call.1} parent=11 // pred_fallthru
          _
        // Predicated region
        $region21: #{tpu_custom_call.1} parent=11 // pred_check
          %p206 = pneg %p106
        $region22: #{tpu_custom_call.1} parent=11 // pred_check_branch
          %208 = sbr.rel (%p206) target = $region24
        $region23: #{tpu_custom_call.1} parent=11 // pred_region
          _
        $region24: #{tpu_custom_call.1} parent=11 // pred_fallthru
          _
        // Predicated region
        $region25: #{tpu_custom_call.1} parent=11 // pred_check
          %p209 = pneg %p127
        $region26: #{tpu_custom_call.1} parent=11 // pred_check_branch
          %211 = sbr.rel (%p209) target = $region28
        $region27: #{tpu_custom_call.1} parent=11 // pred_region
          %213 = vsyncadd [#allocation10], 0
          %s214 = sshll.u32 %s4, 4
          %s215 = int_to_ptr.hbm [resolvable:$true] %s214
          %s216 = sshll.u32 [#allocation9], 4
          %s217 = int_to_ptr.vmem [resolvable:$true] %s216
          %222 = dma.hbm_to_vmem [thread:$0]  %s215, 2048, %s217, [#allocation10], 128, 128, 8
        $region28: #{tpu_custom_call.1} parent=11 // pred_fallthru
          _
        // Predicated region
        $region29: #{tpu_custom_call.1} parent=11 // pred_check
          %p223 = pneg %p148
        $region30: #{tpu_custom_call.1} parent=11 // pred_check_branch
          %225 = sbr.rel (%p223) target = $region32
        $region31: #{tpu_custom_call.1} parent=11 // pred_region
          _
        $region32: #{tpu_custom_call.1} parent=11 // pred_fallthru
          _
      $region12: #{tpu_custom_call.1} parent=5 // pred_fallthru
        _
      %p226 = scmp.lt.s32.totalorder %s17, 3
      // Predicated region
      $region33: #{tpu_custom_call.1} parent=5 // pred_check
        %p227 = pneg %p226
      $region34: #{tpu_custom_call.1} parent=5 // pred_check_branch
        %229 = sbr.rel (%p227) target = $region36
      $region35: #{tpu_custom_call.1} parent=5 // pred_region
        // Predicated region
        $region37: #{tpu_custom_call.1} parent=35 // pred_check
          %p230 = pneg %p37
        $region38: #{tpu_custom_call.1} parent=35 // pred_check_branch
          %232 = sbr.rel (%p230) target = $region40
        $region39: #{tpu_custom_call.1} parent=35 // pred_region
          %s233 = smul.u32 4, %s17
          %p234 = scmp.lt.s32.totalorder %s233, 11
          %s235 = scalar_select %p234, %s233, 11
          %s236 = smul.addr %s235, 8
          %s237 = scalar_lea.vmem %s0, %s236
          %s238 = smul.u32 4, %s17
        $region40: #{tpu_custom_call.1} parent=35 // pred_fallthru
          _
      $region36: #{tpu_custom_call.1} parent=5 // pred_fallthru
        _
      %p239 = scmp.le.s32.totalorder 1, %s17
      %p240 = scmp.lt.s32.totalorder %s17, 4
      %p241 = pnand %p239, %p240
      %p242 = pneg %p241
      // Predicated region
      $region41: #{tpu_custom_call.1} parent=5 // pred_check
        _
      $region42: #{tpu_custom_call.1} parent=5 // pred_check_branch
        %244 = sbr.rel (%p241) target = $region44
      $region43: #{tpu_custom_call.1} parent=5 // pred_region
        %s245 = ssub.s32 %s17, 1
        // Predicated region
        $region45: #{tpu_custom_call.1} parent=43 // pred_check
          %p246 = pneg %p85
        $region46: #{tpu_custom_call.1} parent=43 // pred_check_branch
          %248 = sbr.rel (%p246) target = $region48
        $region47: #{tpu_custom_call.1} parent=43 // pred_region
          %250 = dma.done [#allocation7], 8192
        $region48: #{tpu_custom_call.1} parent=43 // pred_fallthru
          _
        // Predicated region
        $region49: #{tpu_custom_call.1} parent=43 // pred_check
          %p251 = pneg %p127
        $region50: #{tpu_custom_call.1} parent=43 // pred_check_branch
          %253 = sbr.rel (%p251) target = $region52
        $region51: #{tpu_custom_call.1} parent=43 // pred_region
          %255 = dma.done [#allocation10], 2048
        $region52: #{tpu_custom_call.1} parent=43 // pred_fallthru
          _
        %s256 = smul.u32 4, %s22
        %p257 = scmp.lt.s32.totalorder %s256, 11
        %s258 = scalar_select %p257, %s256, 11
        %s259 = smul.addr %s258, 8
        %s260 = scalar_lea.vmem %s0, %s259
        %p261 = pneg %p43
        %p262 = pneg %p40
        %p263 = pneg %p64
        %p264 = pneg %p61
        %p265 = pneg %p85
        %p266 = pneg %p82
        %p267 = pneg %p106
        %p268 = pneg %p103
        %p269 = pneg %p127
        %p270 = pneg %p124
        %p271 = pneg %p148
        %p272 = pneg %p145
        %p273 = pneg %p174
        %p274 = pneg %p171
        %s275 = sand.u32 %s161, 1
        %s276 = scalar_lea.sflag [#allocation8], %s275
        %s277 = sand.u32 %s161, 1
        %s278 = smul.addr %s277, 32
        %s279 = scalar_lea.vmem [#allocation11], %s278
        %s280 = smul.u32 4, %s22
        %p281 = scmp.lt.s32.totalorder %s280, 11
        %s282 = scalar_select %p281, %s280, 11
        %s283 = smul.addr %s282, 8
        %s284 = scalar_lea.vmem %s0, %s283
        %s285 = smul.u32 4, %s22
        %s286 = smul.u32 4, %s22
        %p287 = scmp.eq.s32.totalorder %s22, 0
        // Predicated region
        $region53: #{tpu_custom_call.1} parent=43 // pred_check
          %p288 = pneg %p287
        $region54: #{tpu_custom_call.1} parent=43 // pred_check_branch
          %290 = sbr.rel (%p288) target = $region56
        $region55: #{tpu_custom_call.1} parent=43 // pred_region
          %291 = vst [vmem:[#allocation2] sm:$0xff] 0.0
          %292 = vst [vmem:[#allocation3] sm:$0xff] 0.0
        $region56: #{tpu_custom_call.1} parent=43 // pred_fallthru
          _
        %v293 = vld [vmem:[%s284] sm:$0xff]
        %v294 = vld [vmem:[%s284 + $0x8] sm:$0xff]
        %v295 = vld [vmem:[%s284 + $0x10] sm:$0xff]
        %v296 = vld [vmem:[%s284 + $0x18] sm:$0xff]
        %v297 = vld [vmem:[%s1] sm:$0xff]
        %v298 = vld [vmem:[%s1 + $0x8] sm:$0xff]
        %v299 = vld [vmem:[%s1 + $0x10] sm:$0xff]
        %v300 = vld [vmem:[%s1 + $0x18] sm:$0xff]
        %v301 = vld [vmem:[%s1 + $0x20] sm:$0xff]
        %v302 = vld [vmem:[%s1 + $0x28] sm:$0xff]
        %v303 = vld [vmem:[%s1 + $0x30] sm:$0xff]
        %v304 = vld [vmem:[%s1 + $0x38] sm:$0xff]
        %v305 = vld [vmem:[%s3] sm:$0xf]
        %v307 = vperm.slane %v305, 0
        %v308 = vperm.slane %v305, 1
        %v309 = vperm.slane %v305, 2
        %v310 = vperm.slane %v305, 3
        %vm315 = vcmask 130048
        %v317 = vsel %vm315, %v293, 0
        %v320 = vsel %vm315, %v294, 0
        %v323 = vsel %vm315, %v295, 0
        %v326 = vsel %vm315, %v296, 0
        %328 = vmatpush.msra.mxu0 0.0
        %329 = vmatpush.msra.mxu0 0.0
        %330 = vmatpush.msra.mxu0 0.0
        %331 = vmatpush.msra.mxu0 0.0
        %332 = vmatpush.msra.mxu0 0.0
        %333 = vmatpush.msra.mxu0 0.0
        %334 = vmatpush.msra.mxu0 0.0
        %335 = vmatpush.msra.mxu0 0.0
        %336 = vmatpush.msra.mxu0 0.0
        %337 = vmatpush.msra.mxu0 0.0
        %338 = vmatpush.msra.mxu0 0.0
        %339 = vmatpush.msra.mxu0 0.0
        %340 = vmatpush.msra.mxu0 0.0
        %341 = vmatpush.msra.mxu0 0.0
        %342 = vmatpush.msra.mxu0 %v301
        %343 = vmatpush.msra.mxu0 %v297
        %344 = vmatmul.f32.gmra.mxu0 %v317
        %v345 = vpop.f32.mrf.mxu0
        %v346 = vadd.f32 %v307, %v345
        %347 = vmatmul.f32.gmra.mxu0 %v320
        %v348 = vpop.f32.mrf.mxu0
        %v349 = vadd.f32 %v307, %v348
        %350 = vmatmul.f32.gmra.mxu0 %v323
        %v351 = vpop.f32.mrf.mxu0
        %v352 = vadd.f32 %v307, %v351
        %353 = vmatmul.f32.gmra.mxu0 %v326
        %v354 = vpop.f32.mrf.mxu0
        %v355 = vadd.f32 %v307, %v354
        %356 = vdwg.mxu0
        %357 = vmatpush.msra.mxu0 0.0
        %358 = vmatpush.msra.mxu0 0.0
        %359 = vmatpush.msra.mxu0 0.0
        %360 = vmatpush.msra.mxu0 0.0
        %361 = vmatpush.msra.mxu0 0.0
        %362 = vmatpush.msra.mxu0 0.0
        %363 = vmatpush.msra.mxu0 0.0
        %364 = vmatpush.msra.mxu0 0.0
        %365 = vmatpush.msra.mxu0 0.0
        %366 = vmatpush.msra.mxu0 0.0
        %367 = vmatpush.msra.mxu0 0.0
        %368 = vmatpush.msra.mxu0 0.0
        %369 = vmatpush.msra.mxu0 0.0
        %370 = vmatpush.msra.mxu0 0.0
        %371 = vmatpush.msra.mxu0 %v302
        %372 = vmatpush.msra.mxu0 %v298
        %373 = vmatmul.f32.gmra.mxu0 %v317
        %v374 = vpop.f32.mrf.mxu0
        %v375 = vadd.f32 %v308, %v374
        %376 = vmatmul.f32.gmra.mxu0 %v320
        %v377 = vpop.f32.mrf.mxu0
        %v378 = vadd.f32 %v308, %v377
        %379 = vmatmul.f32.gmra.mxu0 %v323
        %v380 = vpop.f32.mrf.mxu0
        %v381 = vadd.f32 %v308, %v380
        %382 = vmatmul.f32.gmra.mxu0 %v326
        %v383 = vpop.f32.mrf.mxu0
        %v384 = vadd.f32 %v308, %v383
        %385 = vdwg.mxu0
        %386 = vmatpush.msra.mxu0 0.0
        %387 = vmatpush.msra.mxu0 0.0
        %388 = vmatpush.msra.mxu0 0.0
        %389 = vmatpush.msra.mxu0 0.0
        %390 = vmatpush.msra.mxu0 0.0
        %391 = vmatpush.msra.mxu0 0.0
        %392 = vmatpush.msra.mxu0 0.0
        %393 = vmatpush.msra.mxu0 0.0
        %394 = vmatpush.msra.mxu0 0.0
        %395 = vmatpush.msra.mxu0 0.0
        %396 = vmatpush.msra.mxu0 0.0
        %397 = vmatpush.msra.mxu0 0.0
        %398 = vmatpush.msra.mxu0 0.0
        %399 = vmatpush.msra.mxu0 0.0
        %400 = vmatpush.msra.mxu0 %v303
        %401 = vmatpush.msra.mxu0 %v299
        %402 = vmatmul.f32.gmra.mxu0 %v317
        %v403 = vpop.f32.mrf.mxu0
        %v404 = vadd.f32 %v309, %v403
        %405 = vmatmul.f32.gmra.mxu0 %v320
        %v406 = vpop.f32.mrf.mxu0
        %v407 = vadd.f32 %v309, %v406
        %408 = vmatmul.f32.gmra.mxu0 %v323
        %v409 = vpop.f32.mrf.mxu0
        %v410 = vadd.f32 %v309, %v409
        %411 = vmatmul.f32.gmra.mxu0 %v326
        %v412 = vpop.f32.mrf.mxu0
        %v413 = vadd.f32 %v309, %v412
        %414 = vdwg.mxu0
        %415 = vmatpush.msra.mxu0 0.0
        %416 = vmatpush.msra.mxu0 0.0
        %417 = vmatpush.msra.mxu0 0.0
        %418 = vmatpush.msra.mxu0 0.0
        %419 = vmatpush.msra.mxu0 0.0
        %420 = vmatpush.msra.mxu0 0.0
        %421 = vmatpush.msra.mxu0 0.0
        %422 = vmatpush.msra.mxu0 0.0
        %423 = vmatpush.msra.mxu0 0.0
        %424 = vmatpush.msra.mxu0 0.0
        %425 = vmatpush.msra.mxu0 0.0
        %426 = vmatpush.msra.mxu0 0.0
        %427 = vmatpush.msra.mxu0 0.0
        %428 = vmatpush.msra.mxu0 0.0
        %429 = vmatpush.msra.mxu0 %v304
        %430 = vmatpush.msra.mxu0 %v300
        %431 = vmatmul.f32.gmra.mxu0 %v317
        %v432 = vpop.f32.mrf.mxu0
        %v433 = vadd.f32 %v310, %v432
        %434 = vmatmul.f32.gmra.mxu0 %v320
        %v435 = vpop.f32.mrf.mxu0
        %v436 = vadd.f32 %v310, %v435
        %437 = vmatmul.f32.gmra.mxu0 %v323
        %v438 = vpop.f32.mrf.mxu0
        %v439 = vadd.f32 %v310, %v438
        %440 = vmatmul.f32.gmra.mxu0 %v326
        %v441 = vpop.f32.mrf.mxu0
        %v442 = vadd.f32 %v310, %v441
        %443 = vdwg.mxu0
        %444 = vst [vmem:[#allocation4] sm:$0xff] %v346
        %445 = vst [vmem:[#allocation4 + $0x8] sm:$0xff] %v375
        %446 = vst [vmem:[#allocation4 + $0x10] sm:$0xff] %v404
        %447 = vst [vmem:[#allocation4 + $0x18] sm:$0xff] %v433
        %448 = vst [vmem:[#allocation4 + $0x20] sm:$0xff] %v349
        %449 = vst [vmem:[#allocation4 + $0x28] sm:$0xff] %v378
        %450 = vst [vmem:[#allocation4 + $0x30] sm:$0xff] %v407
        %451 = vst [vmem:[#allocation4 + $0x38] sm:$0xff] %v436
        %452 = vst [vmem:[#allocation4 + $0x40] sm:$0xff] %v352
        %453 = vst [vmem:[#allocation4 + $0x48] sm:$0xff] %v381
        %454 = vst [vmem:[#allocation4 + $0x50] sm:$0xff] %v410
        %455 = vst [vmem:[#allocation4 + $0x58] sm:$0xff] %v439
        %456 = vst [vmem:[#allocation4 + $0x60] sm:$0xff] %v355
        %457 = vst [vmem:[#allocation4 + $0x68] sm:$0xff] %v384
        %458 = vst [vmem:[#allocation4 + $0x70] sm:$0xff] %v413
        %459 = vst [vmem:[#allocation4 + $0x78] sm:$0xff] %v442
        %v460 = vld [vmem:[#allocation2] sm:$0xff]
        %v461 = vld [vmem:[#allocation3] sm:$0xff]
        %s462 = smul.u32 0, 4
        %s463 = smul.addr %s462, 8
        %s464 = scalar_lea.vmem [#allocation4], %s463
        %v465 = vld [vmem:[%s464] sm:$0xff]
        %v466 = vld [vmem:[%s464 + $0x8] sm:$0xff]
        %v467 = vld [vmem:[%s464 + $0x10] sm:$0xff]
        %v468 = vld [vmem:[%s464 + $0x18] sm:$0xff]
        %v469 = vld [vmem:[#allocation6] sm:$0xff]
        %v470 = vld [vmem:[#allocation6 + $0x8] sm:$0xff]
        %v471 = vld [vmem:[#allocation6 + $0x10] sm:$0xff]
        %v472 = vld [vmem:[#allocation6 + $0x18] sm:$0xff]
        %v473 = vld [vmem:[#allocation6 + $0x20] sm:$0xff]
        %v474 = vld [vmem:[#allocation6 + $0x28] sm:$0xff]
        %v475 = vld [vmem:[#allocation6 + $0x30] sm:$0xff]
        %v476 = vld [vmem:[#allocation6 + $0x38] sm:$0xff]
        %v477 = vld [vmem:[#allocation6 + $0x40] sm:$0xff]
        %v478 = vld [vmem:[#allocation6 + $0x48] sm:$0xff]
        %v479 = vld [vmem:[#allocation6 + $0x50] sm:$0xff]
        %v480 = vld [vmem:[#allocation6 + $0x58] sm:$0xff]
        %v481 = vld [vmem:[#allocation6 + $0x60] sm:$0xff]
        %v482 = vld [vmem:[#allocation6 + $0x68] sm:$0xff]
        %v483 = vld [vmem:[#allocation6 + $0x70] sm:$0xff]
        %v484 = vld [vmem:[#allocation6 + $0x78] sm:$0xff]
        %v485 = vld [vmem:[#allocation6 + $0x80] sm:$0xff]
        %v486 = vld [vmem:[#allocation6 + $0x88] sm:$0xff]
        %v487 = vld [vmem:[#allocation6 + $0x90] sm:$0xff]
        %v488 = vld [vmem:[#allocation6 + $0x98] sm:$0xff]
        %v489 = vld [vmem:[#allocation6 + $0xa0] sm:$0xff]
        %v490 = vld [vmem:[#allocation6 + $0xa8] sm:$0xff]
        %v491 = vld [vmem:[#allocation6 + $0xb0] sm:$0xff]
        %v492 = vld [vmem:[#allocation6 + $0xb8] sm:$0xff]
        %v493 = vld [vmem:[#allocation6 + $0xc0] sm:$0xff]
        %v494 = vld [vmem:[#allocation6 + $0xc8] sm:$0xff]
        %v495 = vld [vmem:[#allocation6 + $0xd0] sm:$0xff]
        %v496 = vld [vmem:[#allocation6 + $0xd8] sm:$0xff]
        %v497 = vld [vmem:[#allocation6 + $0xe0] sm:$0xff]
        %v498 = vld [vmem:[#allocation6 + $0xe8] sm:$0xff]
        %v499 = vld [vmem:[#allocation6 + $0xf0] sm:$0xff]
        %v500 = vld [vmem:[#allocation6 + $0xf8] sm:$0xff]
        %v501 = vld [vmem:[#allocation6 + $0x100] sm:$0xff]
        %v502 = vld [vmem:[#allocation6 + $0x108] sm:$0xff]
        %v503 = vld [vmem:[#allocation6 + $0x110] sm:$0xff]
        %v504 = vld [vmem:[#allocation6 + $0x118] sm:$0xff]
        %v505 = vld [vmem:[#allocation6 + $0x120] sm:$0xff]
        %v506 = vld [vmem:[#allocation6 + $0x128] sm:$0xff]
        %v507 = vld [vmem:[#allocation6 + $0x130] sm:$0xff]
        %v508 = vld [vmem:[#allocation6 + $0x138] sm:$0xff]
        %v509 = vld [vmem:[#allocation6 + $0x140] sm:$0xff]
        %v510 = vld [vmem:[#allocation6 + $0x148] sm:$0xff]
        %v511 = vld [vmem:[#allocation6 + $0x150] sm:$0xff]
        %v512 = vld [vmem:[#allocation6 + $0x158] sm:$0xff]
        %v513 = vld [vmem:[#allocation6 + $0x160] sm:$0xff]
        %v514 = vld [vmem:[#allocation6 + $0x168] sm:$0xff]
        %v515 = vld [vmem:[#allocation6 + $0x170] sm:$0xff]
        %v516 = vld [vmem:[#allocation6 + $0x178] sm:$0xff]
        %v517 = vld [vmem:[#allocation6 + $0x180] sm:$0xff]
        %v518 = vld [vmem:[#allocation6 + $0x188] sm:$0xff]
        %v519 = vld [vmem:[#allocation6 + $0x190] sm:$0xff]
        %v520 = vld [vmem:[#allocation6 + $0x198] sm:$0xff]
        %v521 = vld [vmem:[#allocation6 + $0x1a0] sm:$0xff]
        %v522 = vld [vmem:[#allocation6 + $0x1a8] sm:$0xff]
        %v523 = vld [vmem:[#allocation6 + $0x1b0] sm:$0xff]
        %v524 = vld [vmem:[#allocation6 + $0x1b8] sm:$0xff]
        %v525 = vld [vmem:[#allocation6 + $0x1c0] sm:$0xff]
        %v526 = vld [vmem:[#allocation6 + $0x1c8] sm:$0xff]
        %v527 = vld [vmem:[#allocation6 + $0x1d0] sm:$0xff]
        %v528 = vld [vmem:[#allocation6 + $0x1d8] sm:$0xff]
        %v529 = vld [vmem:[#allocation6 + $0x1e0] sm:$0xff]
        %v530 = vld [vmem:[#allocation6 + $0x1e8] sm:$0xff]
        %v531 = vld [vmem:[#allocation6 + $0x1f0] sm:$0xff]
        %v532 = vld [vmem:[#allocation6 + $0x1f8] sm:$0xff]
        %533 = vmatpush.msra.mxu0 %v529
        %534 = vmatpush.msra.mxu0 %v525
        %535 = vmatpush.msra.mxu0 %v521
        %536 = vmatpush.msra.mxu0 %v517
        %537 = vmatpush.msra.mxu0 %v513
        %538 = vmatpush.msra.mxu0 %v509
        %539 = vmatpush.msra.mxu0 %v505
        %540 = vmatpush.msra.mxu0 %v501
        %541 = vmatpush.msra.mxu0 %v497
        %542 = vmatpush.msra.mxu0 %v493
        %543 = vmatpush.msra.mxu0 %v489
        %544 = vmatpush.msra.mxu0 %v485
        %545 = vmatpush.msra.mxu0 %v481
        %546 = vmatpush.msra.mxu0 %v477
        %547 = vmatpush.msra.mxu0 %v473
        %548 = vmatpush.msra.mxu0 %v469
        %549 = vmatmul.f32.gmra.mxu0 %v460
        %v550 = vpop.f32.mrf.mxu0
        %v551 = vadd.f32 0.0, %v550
        %552 = vdwg.mxu0
        %553 = vmatpush.msra.mxu0 %v530
        %554 = vmatpush.msra.mxu0 %v526
        %555 = vmatpush.msra.mxu0 %v522
        %556 = vmatpush.msra.mxu0 %v518
        %557 = vmatpush.msra.mxu0 %v514
        %558 = vmatpush.msra.mxu0 %v510
        %559 = vmatpush.msra.mxu0 %v506
        %560 = vmatpush.msra.mxu0 %v502
        %561 = vmatpush.msra.mxu0 %v498
        %562 = vmatpush.msra.mxu0 %v494
        %563 = vmatpush.msra.mxu0 %v490
        %564 = vmatpush.msra.mxu0 %v486
        %565 = vmatpush.msra.mxu0 %v482
        %566 = vmatpush.msra.mxu0 %v478
        %567 = vmatpush.msra.mxu0 %v474
        %568 = vmatpush.msra.mxu0 %v470
        %569 = vmatmul.f32.gmra.mxu0 %v460
        %v570 = vpop.f32.mrf.mxu0
        %v571 = vadd.f32 0.0, %v570
        %572 = vdwg.mxu0
        %573 = vmatpush.msra.mxu0 %v531
        %574 = vmatpush.msra.mxu0 %v527
        %575 = vmatpush.msra.mxu0 %v523
        %576 = vmatpush.msra.mxu0 %v519
        %577 = vmatpush.msra.mxu0 %v515
        %578 = vmatpush.msra.mxu0 %v511
        %579 = vmatpush.msra.mxu0 %v507
        %580 = vmatpush.msra.mxu0 %v503
        %581 = vmatpush.msra.mxu0 %v499
        %582 = vmatpush.msra.mxu0 %v495
        %583 = vmatpush.msra.mxu0 %v491
        %584 = vmatpush.msra.mxu0 %v487
        %585 = vmatpush.msra.mxu0 %v483
        %586 = vmatpush.msra.mxu0 %v479
        %587 = vmatpush.msra.mxu0 %v475
        %588 = vmatpush.msra.mxu0 %v471
        %589 = vmatmul.f32.gmra.mxu0 %v460
        %v590 = vpop.f32.mrf.mxu0
        %v591 = vadd.f32 0.0, %v590
        %592 = vdwg.mxu0
        %593 = vmatpush.msra.mxu0 %v532
        %594 = vmatpush.msra.mxu0 %v528
        %595 = vmatpush.msra.mxu0 %v524
        %596 = vmatpush.msra.mxu0 %v520
        %597 = vmatpush.msra.mxu0 %v516
        %598 = vmatpush.msra.mxu0 %v512
        %599 = vmatpush.msra.mxu0 %v508
        %600 = vmatpush.msra.mxu0 %v504
        %601 = vmatpush.msra.mxu0 %v500
        %602 = vmatpush.msra.mxu0 %v496
        %603 = vmatpush.msra.mxu0 %v492
        %604 = vmatpush.msra.mxu0 %v488
        %605 = vmatpush.msra.mxu0 %v484
        %606 = vmatpush.msra.mxu0 %v480
        %607 = vmatpush.msra.mxu0 %v476
        %608 = vmatpush.msra.mxu0 %v472
        %609 = vmatmul.f32.gmra.mxu0 %v460
        %v610 = vpop.f32.mrf.mxu0
        %v611 = vadd.f32 0.0, %v610
        %612 = vdwg.mxu0
        %v613 = vadd.f32 %v465, %v551
        %v614 = vadd.f32 %v466, %v571
        %v615 = vadd.f32 %v467, %v591
        %v616 = vadd.f32 %v468, %v611
        %v617 = vxor.u32 %v613, 2147483648
        %v618 = vmul.f32 %v617, 1.442695
        %v619 = vpow.pop %v618
        %v620 = vadd.f32 %v619, 1.0
        %v621 = vrcp.pop %v620
        %v622 = vmul.f32 %v620, %v621
        %v623 = vsub.f32 1.0, %v622
        %v624 = vmul.f32 %v621, %v623
        %v625 = vadd.f32 %v621, %v624
        %vm626 = vweird.f32 %v620
        %vm627 = vweird.f32 %v621
        %vm628 = vmor %vm626, %vm627
        %v629 = vsel %vm628, %v621, %v625
        %v630 = vand.u32 2147483647, %v620
        %vm631 = vcmp.eq.f32.partialorder %v630, 8.507059e+37
        %v632 = vand.u32 %v620, 2147483648
        %v633 = vor.u32 1.1754944e-38, %v632
        %v634 = vsel %vm631, %v633, %v629
        %v635 = vmul.f32 1.0, %v634
        %v636 = vxor.u32 %v614, 2147483648
        %v637 = vmul.f32 %v636, 1.442695
        %v638 = vpow.pop %v637
        %v639 = vadd.f32 %v638, 1.0
        %v640 = vrcp.pop %v639
        %v641 = vmul.f32 %v639, %v640
        %v642 = vsub.f32 1.0, %v641
        %v643 = vmul.f32 %v640, %v642
        %v644 = vadd.f32 %v640, %v643
        %vm645 = vweird.f32 %v639
        %vm646 = vweird.f32 %v640
        %vm647 = vmor %vm645, %vm646
        %v648 = vsel %vm647, %v640, %v644
        %v649 = vand.u32 2147483647, %v639
        %vm650 = vcmp.eq.f32.partialorder %v649, 8.507059e+37
        %v651 = vand.u32 %v639, 2147483648
        %v652 = vor.u32 1.1754944e-38, %v651
        %v653 = vsel %vm650, %v652, %v648
        %v654 = vmul.f32 1.0, %v653
        %v655 = vtanh.pop %v615
        %v656 = vxor.u32 %v616, 2147483648
        %v657 = vmul.f32 %v656, 1.442695
        %v658 = vpow.pop %v657
        %v659 = vadd.f32 %v658, 1.0
        %v660 = vrcp.pop %v659
        %v661 = vmul.f32 %v659, %v660
        %v662 = vsub.f32 1.0, %v661
        %v663 = vmul.f32 %v660, %v662
        %v664 = vadd.f32 %v660, %v663
        %vm665 = vweird.f32 %v659
        %vm666 = vweird.f32 %v660
        %vm667 = vmor %vm665, %vm666
        %v668 = vsel %vm667, %v660, %v664
        %v669 = vand.u32 2147483647, %v659
        %vm670 = vcmp.eq.f32.partialorder %v669, 8.507059e+37
        %v671 = vand.u32 %v659, 2147483648
        %v672 = vor.u32 1.1754944e-38, %v671
        %v673 = vsel %vm670, %v672, %v668
        %v674 = vmul.f32 1.0, %v673
        %v675 = vmul.f32 %v654, %v461
        %v676 = vmul.f32 %v635, %v655
        %v677 = vadd.f32 %v675, %v676
        %v678 = vtanh.pop %v677
        %v679 = vmul.f32 %v674, %v678
        %680 = vst [vmem:[#allocation5] sm:$0xff] %v679
        %s681 = smul.u32 1, 4
        %s682 = smul.addr %s681, 8
        %s683 = scalar_lea.vmem [#allocation4], %s682
        %v684 = vld [vmem:[%s683] sm:$0xff]
        %v685 = vld [vmem:[%s683 + $0x8] sm:$0xff]
        %v686 = vld [vmem:[%s683 + $0x10] sm:$0xff]
        %v687 = vld [vmem:[%s683 + $0x18] sm:$0xff]
        %v688 = vld [vmem:[#allocation6] sm:$0xff]
        %v689 = vld [vmem:[#allocation6 + $0x8] sm:$0xff]
        %v690 = vld [vmem:[#allocation6 + $0x10] sm:$0xff]
        %v691 = vld [vmem:[#allocation6 + $0x18] sm:$0xff]
        %v692 = vld [vmem:[#allocation6 + $0x20] sm:$0xff]
        %v693 = vld [vmem:[#allocation6 + $0x28] sm:$0xff]
        %v694 = vld [vmem:[#allocation6 + $0x30] sm:$0xff]
        %v695 = vld [vmem:[#allocation6 + $0x38] sm:$0xff]
        %v696 = vld [vmem:[#allocation6 + $0x40] sm:$0xff]
        %v697 = vld [vmem:[#allocation6 + $0x48] sm:$0xff]
        %v698 = vld [vmem:[#allocation6 + $0x50] sm:$0xff]
        %v699 = vld [vmem:[#allocation6 + $0x58] sm:$0xff]
        %v700 = vld [vmem:[#allocation6 + $0x60] sm:$0xff]
        %v701 = vld [vmem:[#allocation6 + $0x68] sm:$0xff]
        %v702 = vld [vmem:[#allocation6 + $0x70] sm:$0xff]
        %v703 = vld [vmem:[#allocation6 + $0x78] sm:$0xff]
        %v704 = vld [vmem:[#allocation6 + $0x80] sm:$0xff]
        %v705 = vld [vmem:[#allocation6 + $0x88] sm:$0xff]
        %v706 = vld [vmem:[#allocation6 + $0x90] sm:$0xff]
        %v707 = vld [vmem:[#allocation6 + $0x98] sm:$0xff]
        %v708 = vld [vmem:[#allocation6 + $0xa0] sm:$0xff]
        %v709 = vld [vmem:[#allocation6 + $0xa8] sm:$0xff]
        %v710 = vld [vmem:[#allocation6 + $0xb0] sm:$0xff]
        %v711 = vld [vmem:[#allocation6 + $0xb8] sm:$0xff]
        %v712 = vld [vmem:[#allocation6 + $0xc0] sm:$0xff]
        %v713 = vld [vmem:[#allocation6 + $0xc8] sm:$0xff]
        %v714 = vld [vmem:[#allocation6 + $0xd0] sm:$0xff]
        %v715 = vld [vmem:[#allocation6 + $0xd8] sm:$0xff]
        %v716 = vld [vmem:[#allocation6 + $0xe0] sm:$0xff]
        %v717 = vld [vmem:[#allocation6 + $0xe8] sm:$0xff]
        %v718 = vld [vmem:[#allocation6 + $0xf0] sm:$0xff]
        %v719 = vld [vmem:[#allocation6 + $0xf8] sm:$0xff]
        %v720 = vld [vmem:[#allocation6 + $0x100] sm:$0xff]
        %v721 = vld [vmem:[#allocation6 + $0x108] sm:$0xff]
        %v722 = vld [vmem:[#allocation6 + $0x110] sm:$0xff]
        %v723 = vld [vmem:[#allocation6 + $0x118] sm:$0xff]
        %v724 = vld [vmem:[#allocation6 + $0x120] sm:$0xff]
        %v725 = vld [vmem:[#allocation6 + $0x128] sm:$0xff]
        %v726 = vld [vmem:[#allocation6 + $0x130] sm:$0xff]
        %v727 = vld [vmem:[#allocation6 + $0x138] sm:$0xff]
        %v728 = vld [vmem:[#allocation6 + $0x140] sm:$0xff]
        %v729 = vld [vmem:[#allocation6 + $0x148] sm:$0xff]
        %v730 = vld [vmem:[#allocation6 + $0x150] sm:$0xff]
        %v731 = vld [vmem:[#allocation6 + $0x158] sm:$0xff]
        %v732 = vld [vmem:[#allocation6 + $0x160] sm:$0xff]
        %v733 = vld [vmem:[#allocation6 + $0x168] sm:$0xff]
        %v734 = vld [vmem:[#allocation6 + $0x170] sm:$0xff]
        %v735 = vld [vmem:[#allocation6 + $0x178] sm:$0xff]
        %v736 = vld [vmem:[#allocation6 + $0x180] sm:$0xff]
        %v737 = vld [vmem:[#allocation6 + $0x188] sm:$0xff]
        %v738 = vld [vmem:[#allocation6 + $0x190] sm:$0xff]
        %v739 = vld [vmem:[#allocation6 + $0x198] sm:$0xff]
        %v740 = vld [vmem:[#allocation6 + $0x1a0] sm:$0xff]
        %v741 = vld [vmem:[#allocation6 + $0x1a8] sm:$0xff]
        %v742 = vld [vmem:[#allocation6 + $0x1b0] sm:$0xff]
        %v743 = vld [vmem:[#allocation6 + $0x1b8] sm:$0xff]
        %v744 = vld [vmem:[#allocation6 + $0x1c0] sm:$0xff]
        %v745 = vld [vmem:[#allocation6 + $0x1c8] sm:$0xff]
        %v746 = vld [vmem:[#allocation6 + $0x1d0] sm:$0xff]
        %v747 = vld [vmem:[#allocation6 + $0x1d8] sm:$0xff]
        %v748 = vld [vmem:[#allocation6 + $0x1e0] sm:$0xff]
        %v749 = vld [vmem:[#allocation6 + $0x1e8] sm:$0xff]
        %v750 = vld [vmem:[#allocation6 + $0x1f0] sm:$0xff]
        %v751 = vld [vmem:[#allocation6 + $0x1f8] sm:$0xff]
        %752 = vmatpush.msra.mxu0 %v748
        %753 = vmatpush.msra.mxu0 %v744
        %754 = vmatpush.msra.mxu0 %v740
        %755 = vmatpush.msra.mxu0 %v736
        %756 = vmatpush.msra.mxu0 %v732
        %757 = vmatpush.msra.mxu0 %v728
        %758 = vmatpush.msra.mxu0 %v724
        %759 = vmatpush.msra.mxu0 %v720
        %760 = vmatpush.msra.mxu0 %v716
        %761 = vmatpush.msra.mxu0 %v712
        %762 = vmatpush.msra.mxu0 %v708
        %763 = vmatpush.msra.mxu0 %v704
        %764 = vmatpush.msra.mxu0 %v700
        %765 = vmatpush.msra.mxu0 %v696
        %766 = vmatpush.msra.mxu0 %v692
        %767 = vmatpush.msra.mxu0 %v688
        %768 = vmatmul.f32.gmra.mxu0 %v679
        %v769 = vpop.f32.mrf.mxu0
        %v770 = vadd.f32 0.0, %v769
        %771 = vdwg.mxu0
        %772 = vmatpush.msra.mxu0 %v749
        %773 = vmatpush.msra.mxu0 %v745
        %774 = vmatpush.msra.mxu0 %v741
        %775 = vmatpush.msra.mxu0 %v737
        %776 = vmatpush.msra.mxu0 %v733
        %777 = vmatpush.msra.mxu0 %v729
        %778 = vmatpush.msra.mxu0 %v725
        %779 = vmatpush.msra.mxu0 %v721
        %780 = vmatpush.msra.mxu0 %v717
        %781 = vmatpush.msra.mxu0 %v713
        %782 = vmatpush.msra.mxu0 %v709
        %783 = vmatpush.msra.mxu0 %v705
        %784 = vmatpush.msra.mxu0 %v701
        %785 = vmatpush.msra.mxu0 %v697
        %786 = vmatpush.msra.mxu0 %v693
        %787 = vmatpush.msra.mxu0 %v689
        %788 = vmatmul.f32.gmra.mxu0 %v679
        %v789 = vpop.f32.mrf.mxu0
        %v790 = vadd.f32 0.0, %v789
        %791 = vdwg.mxu0
        %792 = vmatpush.msra.mxu0 %v750
        %793 = vmatpush.msra.mxu0 %v746
        %794 = vmatpush.msra.mxu0 %v742
        %795 = vmatpush.msra.mxu0 %v738
        %796 = vmatpush.msra.mxu0 %v734
        %797 = vmatpush.msra.mxu0 %v730
        %798 = vmatpush.msra.mxu0 %v726
        %799 = vmatpush.msra.mxu0 %v722
        %800 = vmatpush.msra.mxu0 %v718
        %801 = vmatpush.msra.mxu0 %v714
        %802 = vmatpush.msra.mxu0 %v710
        %803 = vmatpush.msra.mxu0 %v706
        %804 = vmatpush.msra.mxu0 %v702
        %805 = vmatpush.msra.mxu0 %v698
        %806 = vmatpush.msra.mxu0 %v694
        %807 = vmatpush.msra.mxu0 %v690
        %808 = vmatmul.f32.gmra.mxu0 %v679
        %v809 = vpop.f32.mrf.mxu0
        %v810 = vadd.f32 0.0, %v809
        %811 = vdwg.mxu0
        %812 = vmatpush.msra.mxu0 %v751
        %813 = vmatpush.msra.mxu0 %v747
        %814 = vmatpush.msra.mxu0 %v743
        %815 = vmatpush.msra.mxu0 %v739
        %816 = vmatpush.msra.mxu0 %v735
        %817 = vmatpush.msra.mxu0 %v731
        %818 = vmatpush.msra.mxu0 %v727
        %819 = vmatpush.msra.mxu0 %v723
        %820 = vmatpush.msra.mxu0 %v719
        %821 = vmatpush.msra.mxu0 %v715
        %822 = vmatpush.msra.mxu0 %v711
        %823 = vmatpush.msra.mxu0 %v707
        %824 = vmatpush.msra.mxu0 %v703
        %825 = vmatpush.msra.mxu0 %v699
        %826 = vmatpush.msra.mxu0 %v695
        %827 = vmatpush.msra.mxu0 %v691
        %828 = vmatmul.f32.gmra.mxu0 %v679
        %v829 = vpop.f32.mrf.mxu0
        %v830 = vadd.f32 0.0, %v829
        %831 = vdwg.mxu0
        %v832 = vadd.f32 %v684, %v770
        %v833 = vadd.f32 %v685, %v790
        %v834 = vadd.f32 %v686, %v810
        %v835 = vadd.f32 %v687, %v830
        %v836 = vxor.u32 %v832, 2147483648
        %v837 = vmul.f32 %v836, 1.442695
        %v838 = vpow.pop %v837
        %v839 = vadd.f32 %v838, 1.0
        %v840 = vrcp.pop %v839
        %v841 = vmul.f32 %v839, %v840
        %v842 = vsub.f32 1.0, %v841
        %v843 = vmul.f32 %v840, %v842
        %v844 = vadd.f32 %v840, %v843
        %vm845 = vweird.f32 %v839
        %vm846 = vweird.f32 %v840
        %vm847 = vmor %vm845, %vm846
        %v848 = vsel %vm847, %v840, %v844
        %v849 = vand.u32 2147483647, %v839
        %vm850 = vcmp.eq.f32.partialorder %v849, 8.507059e+37
        %v851 = vand.u32 %v839, 2147483648
        %v852 = vor.u32 1.1754944e-38, %v851
        %v853 = vsel %vm850, %v852, %v848
        %v854 = vmul.f32 1.0, %v853
        %v855 = vxor.u32 %v833, 2147483648
        %v856 = vmul.f32 %v855, 1.442695
        %v857 = vpow.pop %v856
        %v858 = vadd.f32 %v857, 1.0
        %v859 = vrcp.pop %v858
        %v860 = vmul.f32 %v858, %v859
        %v861 = vsub.f32 1.0, %v860
        %v862 = vmul.f32 %v859, %v861
        %v863 = vadd.f32 %v859, %v862
        %vm864 = vweird.f32 %v858
        %vm865 = vweird.f32 %v859
        %vm866 = vmor %vm864, %vm865
        %v867 = vsel %vm866, %v859, %v863
        %v868 = vand.u32 2147483647, %v858
        %vm869 = vcmp.eq.f32.partialorder %v868, 8.507059e+37
        %v870 = vand.u32 %v858, 2147483648
        %v871 = vor.u32 1.1754944e-38, %v870
        %v872 = vsel %vm869, %v871, %v867
        %v873 = vmul.f32 1.0, %v872
        %v874 = vtanh.pop %v834
        %v875 = vxor.u32 %v835, 2147483648
        %v876 = vmul.f32 %v875, 1.442695
        %v877 = vpow.pop %v876
        %v878 = vadd.f32 %v877, 1.0
        %v879 = vrcp.pop %v878
        %v880 = vmul.f32 %v878, %v879
        %v881 = vsub.f32 1.0, %v880
        %v882 = vmul.f32 %v879, %v881
        %v883 = vadd.f32 %v879, %v882
        %vm884 = vweird.f32 %v878
        %vm885 = vweird.f32 %v879
        %vm886 = vmor %vm884, %vm885
        %v887 = vsel %vm886, %v879, %v883
        %v888 = vand.u32 2147483647, %v878
        %vm889 = vcmp.eq.f32.partialorder %v888, 8.507059e+37
        %v890 = vand.u32 %v878, 2147483648
        %v891 = vor.u32 1.1754944e-38, %v890
        %v892 = vsel %vm889, %v891, %v887
        %v893 = vmul.f32 1.0, %v892
        %v894 = vmul.f32 %v873, %v677
        %v895 = vmul.f32 %v854, %v874
        %v896 = vadd.f32 %v894, %v895
        %v897 = vtanh.pop %v896
        %v898 = vmul.f32 %v893, %v897
        %s899 = scalar_lea.vmem [#allocation5], 8
        %900 = vst [vmem:[%s899] sm:$0xff] %v898
        %s901 = smul.u32 2, 4
        %s902 = smul.addr %s901, 8
        %s903 = scalar_lea.vmem [#allocation4], %s902
        %v904 = vld [vmem:[%s903] sm:$0xff]
        %v905 = vld [vmem:[%s903 + $0x8] sm:$0xff]
        %v906 = vld [vmem:[%s903 + $0x10] sm:$0xff]
        %v907 = vld [vmem:[%s903 + $0x18] sm:$0xff]
        %v908 = vld [vmem:[#allocation6] sm:$0xff]
        %v909 = vld [vmem:[#allocation6 + $0x8] sm:$0xff]
        %v910 = vld [vmem:[#allocation6 + $0x10] sm:$0xff]
        %v911 = vld [vmem:[#allocation6 + $0x18] sm:$0xff]
        %v912 = vld [vmem:[#allocation6 + $0x20] sm:$0xff]
        %v913 = vld [vmem:[#allocation6 + $0x28] sm:$0xff]
        %v914 = vld [vmem:[#allocation6 + $0x30] sm:$0xff]
        %v915 = vld [vmem:[#allocation6 + $0x38] sm:$0xff]
        %v916 = vld [vmem:[#allocation6 + $0x40] sm:$0xff]
        %v917 = vld [vmem:[#allocation6 + $0x48] sm:$0xff]
        %v918 = vld [vmem:[#allocation6 + $0x50] sm:$0xff]
        %v919 = vld [vmem:[#allocation6 + $0x58] sm:$0xff]
        %v920 = vld [vmem:[#allocation6 + $0x60] sm:$0xff]
        %v921 = vld [vmem:[#allocation6 + $0x68] sm:$0xff]
        %v922 = vld [vmem:[#allocation6 + $0x70] sm:$0xff]
        %v923 = vld [vmem:[#allocation6 + $0x78] sm:$0xff]
        %v924 = vld [vmem:[#allocation6 + $0x80] sm:$0xff]
        %v925 = vld [vmem:[#allocation6 + $0x88] sm:$0xff]
        %v926 = vld [vmem:[#allocation6 + $0x90] sm:$0xff]
        %v927 = vld [vmem:[#allocation6 + $0x98] sm:$0xff]
        %v928 = vld [vmem:[#allocation6 + $0xa0] sm:$0xff]
        %v929 = vld [vmem:[#allocation6 + $0xa8] sm:$0xff]
        %v930 = vld [vmem:[#allocation6 + $0xb0] sm:$0xff]
        %v931 = vld [vmem:[#allocation6 + $0xb8] sm:$0xff]
        %v932 = vld [vmem:[#allocation6 + $0xc0] sm:$0xff]
        %v933 = vld [vmem:[#allocation6 + $0xc8] sm:$0xff]
        %v934 = vld [vmem:[#allocation6 + $0xd0] sm:$0xff]
        %v935 = vld [vmem:[#allocation6 + $0xd8] sm:$0xff]
        %v936 = vld [vmem:[#allocation6 + $0xe0] sm:$0xff]
        %v937 = vld [vmem:[#allocation6 + $0xe8] sm:$0xff]
        %v938 = vld [vmem:[#allocation6 + $0xf0] sm:$0xff]
        %v939 = vld [vmem:[#allocation6 + $0xf8] sm:$0xff]
        %v940 = vld [vmem:[#allocation6 + $0x100] sm:$0xff]
        %v941 = vld [vmem:[#allocation6 + $0x108] sm:$0xff]
        %v942 = vld [vmem:[#allocation6 + $0x110] sm:$0xff]
        %v943 = vld [vmem:[#allocation6 + $0x118] sm:$0xff]
        %v944 = vld [vmem:[#allocation6 + $0x120] sm:$0xff]
        %v945 = vld [vmem:[#allocation6 + $0x128] sm:$0xff]
        %v946 = vld [vmem:[#allocation6 + $0x130] sm:$0xff]
        %v947 = vld [vmem:[#allocation6 + $0x138] sm:$0xff]
        %v948 = vld [vmem:[#allocation6 + $0x140] sm:$0xff]
        %v949 = vld [vmem:[#allocation6 + $0x148] sm:$0xff]
        %v950 = vld [vmem:[#allocation6 + $0x150] sm:$0xff]
        %v951 = vld [vmem:[#allocation6 + $0x158] sm:$0xff]
        %v952 = vld [vmem:[#allocation6 + $0x160] sm:$0xff]
        %v953 = vld [vmem:[#allocation6 + $0x168] sm:$0xff]
        %v954 = vld [vmem:[#allocation6 + $0x170] sm:$0xff]
        %v955 = vld [vmem:[#allocation6 + $0x178] sm:$0xff]
        %v956 = vld [vmem:[#allocation6 + $0x180] sm:$0xff]
        %v957 = vld [vmem:[#allocation6 + $0x188] sm:$0xff]
        %v958 = vld [vmem:[#allocation6 + $0x190] sm:$0xff]
        %v959 = vld [vmem:[#allocation6 + $0x198] sm:$0xff]
        %v960 = vld [vmem:[#allocation6 + $0x1a0] sm:$0xff]
        %v961 = vld [vmem:[#allocation6 + $0x1a8] sm:$0xff]
        %v962 = vld [vmem:[#allocation6 + $0x1b0] sm:$0xff]
        %v963 = vld [vmem:[#allocation6 + $0x1b8] sm:$0xff]
        %v964 = vld [vmem:[#allocation6 + $0x1c0] sm:$0xff]
        %v965 = vld [vmem:[#allocation6 + $0x1c8] sm:$0xff]
        %v966 = vld [vmem:[#allocation6 + $0x1d0] sm:$0xff]
        %v967 = vld [vmem:[#allocation6 + $0x1d8] sm:$0xff]
        %v968 = vld [vmem:[#allocation6 + $0x1e0] sm:$0xff]
        %v969 = vld [vmem:[#allocation6 + $0x1e8] sm:$0xff]
        %v970 = vld [vmem:[#allocation6 + $0x1f0] sm:$0xff]
        %v971 = vld [vmem:[#allocation6 + $0x1f8] sm:$0xff]
        %972 = vmatpush.msra.mxu0 %v968
        %973 = vmatpush.msra.mxu0 %v964
        %974 = vmatpush.msra.mxu0 %v960
        %975 = vmatpush.msra.mxu0 %v956
        %976 = vmatpush.msra.mxu0 %v952
        %977 = vmatpush.msra.mxu0 %v948
        %978 = vmatpush.msra.mxu0 %v944
        %979 = vmatpush.msra.mxu0 %v940
        %980 = vmatpush.msra.mxu0 %v936
        %981 = vmatpush.msra.mxu0 %v932
        %982 = vmatpush.msra.mxu0 %v928
        %983 = vmatpush.msra.mxu0 %v924
        %984 = vmatpush.msra.mxu0 %v920
        %985 = vmatpush.msra.mxu0 %v916
        %986 = vmatpush.msra.mxu0 %v912
        %987 = vmatpush.msra.mxu0 %v908
        %988 = vmatmul.f32.gmra.mxu0 %v898
        %v989 = vpop.f32.mrf.mxu0
        %v990 = vadd.f32 0.0, %v989
        %991 = vdwg.mxu0
        %992 = vmatpush.msra.mxu0 %v969
        %993 = vmatpush.msra.mxu0 %v965
        %994 = vmatpush.msra.mxu0 %v961
        %995 = vmatpush.msra.mxu0 %v957
        %996 = vmatpush.msra.mxu0 %v953
        %997 = vmatpush.msra.mxu0 %v949
        %998 = vmatpush.msra.mxu0 %v945
        %999 = vmatpush.msra.mxu0 %v941
        %1000 = vmatpush.msra.mxu0 %v937
        %1001 = vmatpush.msra.mxu0 %v933
        %1002 = vmatpush.msra.mxu0 %v929
        %1003 = vmatpush.msra.mxu0 %v925
        %1004 = vmatpush.msra.mxu0 %v921
        %1005 = vmatpush.msra.mxu0 %v917
        %1006 = vmatpush.msra.mxu0 %v913
        %1007 = vmatpush.msra.mxu0 %v909
        %1008 = vmatmul.f32.gmra.mxu0 %v898
        %v1009 = vpop.f32.mrf.mxu0
        %v1010 = vadd.f32 0.0, %v1009
        %1011 = vdwg.mxu0
        %1012 = vmatpush.msra.mxu0 %v970
        %1013 = vmatpush.msra.mxu0 %v966
        %1014 = vmatpush.msra.mxu0 %v962
        %1015 = vmatpush.msra.mxu0 %v958
        %1016 = vmatpush.msra.mxu0 %v954
        %1017 = vmatpush.msra.mxu0 %v950
        %1018 = vmatpush.msra.mxu0 %v946
        %1019 = vmatpush.msra.mxu0 %v942
        %1020 = vmatpush.msra.mxu0 %v938
        %1021 = vmatpush.msra.mxu0 %v934
        %1022 = vmatpush.msra.mxu0 %v930
        %1023 = vmatpush.msra.mxu0 %v926
        %1024 = vmatpush.msra.mxu0 %v922
        %1025 = vmatpush.msra.mxu0 %v918
        %1026 = vmatpush.msra.mxu0 %v914
        %1027 = vmatpush.msra.mxu0 %v910
        %1028 = vmatmul.f32.gmra.mxu0 %v898
        %v1029 = vpop.f32.mrf.mxu0
        %v1030 = vadd.f32 0.0, %v1029
        %1031 = vdwg.mxu0
        %1032 = vmatpush.msra.mxu0 %v971
        %1033 = vmatpush.msra.mxu0 %v967
        %1034 = vmatpush.msra.mxu0 %v963
        %1035 = vmatpush.msra.mxu0 %v959
        %1036 = vmatpush.msra.mxu0 %v955
        %1037 = vmatpush.msra.mxu0 %v951
        %1038 = vmatpush.msra.mxu0 %v947
        %1039 = vmatpush.msra.mxu0 %v943
        %1040 = vmatpush.msra.mxu0 %v939
        %1041 = vmatpush.msra.mxu0 %v935
        %1042 = vmatpush.msra.mxu0 %v931
        %1043 = vmatpush.msra.mxu0 %v927
        %1044 = vmatpush.msra.mxu0 %v923
        %1045 = vmatpush.msra.mxu0 %v919
        %1046 = vmatpush.msra.mxu0 %v915
        %1047 = vmatpush.msra.mxu0 %v911
        %1048 = vmatmul.f32.gmra.mxu0 %v898
        %v1049 = vpop.f32.mrf.mxu0
        %v1050 = vadd.f32 0.0, %v1049
        %1051 = vdwg.mxu0
        %v1052 = vadd.f32 %v904, %v990
        %v1053 = vadd.f32 %v905, %v1010
        %v1054 = vadd.f32 %v906, %v1030
        %v1055 = vadd.f32 %v907, %v1050
        %v1056 = vxor.u32 %v1052, 2147483648
        %v1057 = vmul.f32 %v1056, 1.442695
        %v1058 = vpow.pop %v1057
        %v1059 = vadd.f32 %v1058, 1.0
        %v1060 = vrcp.pop %v1059
        %v1061 = vmul.f32 %v1059, %v1060
        %v1062 = vsub.f32 1.0, %v1061
        %v1063 = vmul.f32 %v1060, %v1062
        %v1064 = vadd.f32 %v1060, %v1063
        %vm1065 = vweird.f32 %v1059
        %vm1066 = vweird.f32 %v1060
        %vm1067 = vmor %vm1065, %vm1066
        %v1068 = vsel %vm1067, %v1060, %v1064
        %v1069 = vand.u32 2147483647, %v1059
        %vm1070 = vcmp.eq.f32.partialorder %v1069, 8.507059e+37
        %v1071 = vand.u32 %v1059, 2147483648
        %v1072 = vor.u32 1.1754944e-38, %v1071
        %v1073 = vsel %vm1070, %v1072, %v1068
        %v1074 = vmul.f32 1.0, %v1073
        %v1075 = vxor.u32 %v1053, 2147483648
        %v1076 = vmul.f32 %v1075, 1.442695
        %v1077 = vpow.pop %v1076
        %v1078 = vadd.f32 %v1077, 1.0
        %v1079 = vrcp.pop %v1078
        %v1080 = vmul.f32 %v1078, %v1079
        %v1081 = vsub.f32 1.0, %v1080
        %v1082 = vmul.f32 %v1079, %v1081
        %v1083 = vadd.f32 %v1079, %v1082
        %vm1084 = vweird.f32 %v1078
        %vm1085 = vweird.f32 %v1079
        %vm1086 = vmor %vm1084, %vm1085
        %v1087 = vsel %vm1086, %v1079, %v1083
        %v1088 = vand.u32 2147483647, %v1078
        %vm1089 = vcmp.eq.f32.partialorder %v1088, 8.507059e+37
        %v1090 = vand.u32 %v1078, 2147483648
        %v1091 = vor.u32 1.1754944e-38, %v1090
        %v1092 = vsel %vm1089, %v1091, %v1087
        %v1093 = vmul.f32 1.0, %v1092
        %v1094 = vtanh.pop %v1054
        %v1095 = vxor.u32 %v1055, 2147483648
        %v1096 = vmul.f32 %v1095, 1.442695
        %v1097 = vpow.pop %v1096
        %v1098 = vadd.f32 %v1097, 1.0
        %v1099 = vrcp.pop %v1098
        %v1100 = vmul.f32 %v1098, %v1099
        %v1101 = vsub.f32 1.0, %v1100
        %v1102 = vmul.f32 %v1099, %v1101
        %v1103 = vadd.f32 %v1099, %v1102
        %vm1104 = vweird.f32 %v1098
        %vm1105 = vweird.f32 %v1099
        %vm1106 = vmor %vm1104, %vm1105
        %v1107 = vsel %vm1106, %v1099, %v1103
        %v1108 = vand.u32 2147483647, %v1098
        %vm1109 = vcmp.eq.f32.partialorder %v1108, 8.507059e+37
        %v1110 = vand.u32 %v1098, 2147483648
        %v1111 = vor.u32 1.1754944e-38, %v1110
        %v1112 = vsel %vm1109, %v1111, %v1107
        %v1113 = vmul.f32 1.0, %v1112
        %v1114 = vmul.f32 %v1093, %v896
        %v1115 = vmul.f32 %v1074, %v1094
        %v1116 = vadd.f32 %v1114, %v1115
        %v1117 = vtanh.pop %v1116
        %v1118 = vmul.f32 %v1113, %v1117
        %s1119 = scalar_lea.vmem [#allocation5], 16
        %1120 = vst [vmem:[%s1119] sm:$0xff] %v1118
        %s1121 = smul.u32 3, 4
        %s1122 = smul.addr %s1121, 8
        %s1123 = scalar_lea.vmem [#allocation4], %s1122
        %v1124 = vld [vmem:[%s1123] sm:$0xff]
        %v1125 = vld [vmem:[%s1123 + $0x8] sm:$0xff]
        %v1126 = vld [vmem:[%s1123 + $0x10] sm:$0xff]
        %v1127 = vld [vmem:[%s1123 + $0x18] sm:$0xff]
        %v1128 = vld [vmem:[#allocation6] sm:$0xff]
        %v1129 = vld [vmem:[#allocation6 + $0x8] sm:$0xff]
        %v1130 = vld [vmem:[#allocation6 + $0x10] sm:$0xff]
        %v1131 = vld [vmem:[#allocation6 + $0x18] sm:$0xff]
        %v1132 = vld [vmem:[#allocation6 + $0x20] sm:$0xff]
        %v1133 = vld [vmem:[#allocation6 + $0x28] sm:$0xff]
        %v1134 = vld [vmem:[#allocation6 + $0x30] sm:$0xff]
        %v1135 = vld [vmem:[#allocation6 + $0x38] sm:$0xff]
        %v1136 = vld [vmem:[#allocation6 + $0x40] sm:$0xff]
        %v1137 = vld [vmem:[#allocation6 + $0x48] sm:$0xff]
        %v1138 = vld [vmem:[#allocation6 + $0x50] sm:$0xff]
        %v1139 = vld [vmem:[#allocation6 + $0x58] sm:$0xff]
        %v1140 = vld [vmem:[#allocation6 + $0x60] sm:$0xff]
        %v1141 = vld [vmem:[#allocation6 + $0x68] sm:$0xff]
        %v1142 = vld [vmem:[#allocation6 + $0x70] sm:$0xff]
        %v1143 = vld [vmem:[#allocation6 + $0x78] sm:$0xff]
        %v1144 = vld [vmem:[#allocation6 + $0x80] sm:$0xff]
        %v1145 = vld [vmem:[#allocation6 + $0x88] sm:$0xff]
        %v1146 = vld [vmem:[#allocation6 + $0x90] sm:$0xff]
        %v1147 = vld [vmem:[#allocation6 + $0x98] sm:$0xff]
        %v1148 = vld [vmem:[#allocation6 + $0xa0] sm:$0xff]
        %v1149 = vld [vmem:[#allocation6 + $0xa8] sm:$0xff]
        %v1150 = vld [vmem:[#allocation6 + $0xb0] sm:$0xff]
        %v1151 = vld [vmem:[#allocation6 + $0xb8] sm:$0xff]
        %v1152 = vld [vmem:[#allocation6 + $0xc0] sm:$0xff]
        %v1153 = vld [vmem:[#allocation6 + $0xc8] sm:$0xff]
        %v1154 = vld [vmem:[#allocation6 + $0xd0] sm:$0xff]
        %v1155 = vld [vmem:[#allocation6 + $0xd8] sm:$0xff]
        %v1156 = vld [vmem:[#allocation6 + $0xe0] sm:$0xff]
        %v1157 = vld [vmem:[#allocation6 + $0xe8] sm:$0xff]
        %v1158 = vld [vmem:[#allocation6 + $0xf0] sm:$0xff]
        %v1159 = vld [vmem:[#allocation6 + $0xf8] sm:$0xff]
        %v1160 = vld [vmem:[#allocation6 + $0x100] sm:$0xff]
        %v1161 = vld [vmem:[#allocation6 + $0x108] sm:$0xff]
        %v1162 = vld [vmem:[#allocation6 + $0x110] sm:$0xff]
        %v1163 = vld [vmem:[#allocation6 + $0x118] sm:$0xff]
        %v1164 = vld [vmem:[#allocation6 + $0x120] sm:$0xff]
        %v1165 = vld [vmem:[#allocation6 + $0x128] sm:$0xff]
        %v1166 = vld [vmem:[#allocation6 + $0x130] sm:$0xff]
        %v1167 = vld [vmem:[#allocation6 + $0x138] sm:$0xff]
        %v1168 = vld [vmem:[#allocation6 + $0x140] sm:$0xff]
        %v1169 = vld [vmem:[#allocation6 + $0x148] sm:$0xff]
        %v1170 = vld [vmem:[#allocation6 + $0x150] sm:$0xff]
        %v1171 = vld [vmem:[#allocation6 + $0x158] sm:$0xff]
        %v1172 = vld [vmem:[#allocation6 + $0x160] sm:$0xff]
        %v1173 = vld [vmem:[#allocation6 + $0x168] sm:$0xff]
        %v1174 = vld [vmem:[#allocation6 + $0x170] sm:$0xff]
        %v1175 = vld [vmem:[#allocation6 + $0x178] sm:$0xff]
        %v1176 = vld [vmem:[#allocation6 + $0x180] sm:$0xff]
        %v1177 = vld [vmem:[#allocation6 + $0x188] sm:$0xff]
        %v1178 = vld [vmem:[#allocation6 + $0x190] sm:$0xff]
        %v1179 = vld [vmem:[#allocation6 + $0x198] sm:$0xff]
        %v1180 = vld [vmem:[#allocation6 + $0x1a0] sm:$0xff]
        %v1181 = vld [vmem:[#allocation6 + $0x1a8] sm:$0xff]
        %v1182 = vld [vmem:[#allocation6 + $0x1b0] sm:$0xff]
        %v1183 = vld [vmem:[#allocation6 + $0x1b8] sm:$0xff]
        %v1184 = vld [vmem:[#allocation6 + $0x1c0] sm:$0xff]
        %v1185 = vld [vmem:[#allocation6 + $0x1c8] sm:$0xff]
        %v1186 = vld [vmem:[#allocation6 + $0x1d0] sm:$0xff]
        %v1187 = vld [vmem:[#allocation6 + $0x1d8] sm:$0xff]
        %v1188 = vld [vmem:[#allocation6 + $0x1e0] sm:$0xff]
        %v1189 = vld [vmem:[#allocation6 + $0x1e8] sm:$0xff]
        %v1190 = vld [vmem:[#allocation6 + $0x1f0] sm:$0xff]
        %v1191 = vld [vmem:[#allocation6 + $0x1f8] sm:$0xff]
        %1192 = vmatpush.msra.mxu0 %v1188
        %1193 = vmatpush.msra.mxu0 %v1184
        %1194 = vmatpush.msra.mxu0 %v1180
        %1195 = vmatpush.msra.mxu0 %v1176
        %1196 = vmatpush.msra.mxu0 %v1172
        %1197 = vmatpush.msra.mxu0 %v1168
        %1198 = vmatpush.msra.mxu0 %v1164
        %1199 = vmatpush.msra.mxu0 %v1160
        %1200 = vmatpush.msra.mxu0 %v1156
        %1201 = vmatpush.msra.mxu0 %v1152
        %1202 = vmatpush.msra.mxu0 %v1148
        %1203 = vmatpush.msra.mxu0 %v1144
        %1204 = vmatpush.msra.mxu0 %v1140
        %1205 = vmatpush.msra.mxu0 %v1136
        %1206 = vmatpush.msra.mxu0 %v1132
        %1207 = vmatpush.msra.mxu0 %v1128
        %1208 = vmatmul.f32.gmra.mxu0 %v1118
        %v1209 = vpop.f32.mrf.mxu0
        %v1210 = vadd.f32 0.0, %v1209
        %1211 = vdwg.mxu0
        %1212 = vmatpush.msra.mxu0 %v1189
        %1213 = vmatpush.msra.mxu0 %v1185
        %1214 = vmatpush.msra.mxu0 %v1181
        %1215 = vmatpush.msra.mxu0 %v1177
        %1216 = vmatpush.msra.mxu0 %v1173
        %1217 = vmatpush.msra.mxu0 %v1169
        %1218 = vmatpush.msra.mxu0 %v1165
        %1219 = vmatpush.msra.mxu0 %v1161
        %1220 = vmatpush.msra.mxu0 %v1157
        %1221 = vmatpush.msra.mxu0 %v1153
        %1222 = vmatpush.msra.mxu0 %v1149
        %1223 = vmatpush.msra.mxu0 %v1145
        %1224 = vmatpush.msra.mxu0 %v1141
        %1225 = vmatpush.msra.mxu0 %v1137
        %1226 = vmatpush.msra.mxu0 %v1133
        %1227 = vmatpush.msra.mxu0 %v1129
        %1228 = vmatmul.f32.gmra.mxu0 %v1118
        %v1229 = vpop.f32.mrf.mxu0
        %v1230 = vadd.f32 0.0, %v1229
        %1231 = vdwg.mxu0
        %1232 = vmatpush.msra.mxu0 %v1190
        %1233 = vmatpush.msra.mxu0 %v1186
        %1234 = vmatpush.msra.mxu0 %v1182
        %1235 = vmatpush.msra.mxu0 %v1178
        %1236 = vmatpush.msra.mxu0 %v1174
        %1237 = vmatpush.msra.mxu0 %v1170
        %1238 = vmatpush.msra.mxu0 %v1166
        %1239 = vmatpush.msra.mxu0 %v1162
        %1240 = vmatpush.msra.mxu0 %v1158
        %1241 = vmatpush.msra.mxu0 %v1154
        %1242 = vmatpush.msra.mxu0 %v1150
        %1243 = vmatpush.msra.mxu0 %v1146
        %1244 = vmatpush.msra.mxu0 %v1142
        %1245 = vmatpush.msra.mxu0 %v1138
        %1246 = vmatpush.msra.mxu0 %v1134
        %1247 = vmatpush.msra.mxu0 %v1130
        %1248 = vmatmul.f32.gmra.mxu0 %v1118
        %v1249 = vpop.f32.mrf.mxu0
        %v1250 = vadd.f32 0.0, %v1249
        %1251 = vdwg.mxu0
        %1252 = vmatpush.msra.mxu0 %v1191
        %1253 = vmatpush.msra.mxu0 %v1187
        %1254 = vmatpush.msra.mxu0 %v1183
        %1255 = vmatpush.msra.mxu0 %v1179
        %1256 = vmatpush.msra.mxu0 %v1175
        %1257 = vmatpush.msra.mxu0 %v1171
        %1258 = vmatpush.msra.mxu0 %v1167
        %1259 = vmatpush.msra.mxu0 %v1163
        %1260 = vmatpush.msra.mxu0 %v1159
        %1261 = vmatpush.msra.mxu0 %v1155
        %1262 = vmatpush.msra.mxu0 %v1151
        %1263 = vmatpush.msra.mxu0 %v1147
        %1264 = vmatpush.msra.mxu0 %v1143
        %1265 = vmatpush.msra.mxu0 %v1139
        %1266 = vmatpush.msra.mxu0 %v1135
        %1267 = vmatpush.msra.mxu0 %v1131
        %1268 = vmatmul.f32.gmra.mxu0 %v1118
        %v1269 = vpop.f32.mrf.mxu0
        %v1270 = vadd.f32 0.0, %v1269
        %1271 = vdwg.mxu0
        %v1272 = vadd.f32 %v1124, %v1210
        %v1273 = vadd.f32 %v1125, %v1230
        %v1274 = vadd.f32 %v1126, %v1250
        %v1275 = vadd.f32 %v1127, %v1270
        %v1276 = vxor.u32 %v1272, 2147483648
        %v1277 = vmul.f32 %v1276, 1.442695
        %v1278 = vpow.pop %v1277
        %v1279 = vadd.f32 %v1278, 1.0
        %v1280 = vrcp.pop %v1279
        %v1281 = vmul.f32 %v1279, %v1280
        %v1282 = vsub.f32 1.0, %v1281
        %v1283 = vmul.f32 %v1280, %v1282
        %v1284 = vadd.f32 %v1280, %v1283
        %vm1285 = vweird.f32 %v1279
        %vm1286 = vweird.f32 %v1280
        %vm1287 = vmor %vm1285, %vm1286
        %v1288 = vsel %vm1287, %v1280, %v1284
        %v1289 = vand.u32 2147483647, %v1279
        %vm1290 = vcmp.eq.f32.partialorder %v1289, 8.507059e+37
        %v1291 = vand.u32 %v1279, 2147483648
        %v1292 = vor.u32 1.1754944e-38, %v1291
        %v1293 = vsel %vm1290, %v1292, %v1288
        %v1294 = vmul.f32 1.0, %v1293
        %v1295 = vxor.u32 %v1273, 2147483648
        %v1296 = vmul.f32 %v1295, 1.442695
        %v1297 = vpow.pop %v1296
        %v1298 = vadd.f32 %v1297, 1.0
        %v1299 = vrcp.pop %v1298
        %v1300 = vmul.f32 %v1298, %v1299
        %v1301 = vsub.f32 1.0, %v1300
        %v1302 = vmul.f32 %v1299, %v1301
        %v1303 = vadd.f32 %v1299, %v1302
        %vm1304 = vweird.f32 %v1298
        %vm1305 = vweird.f32 %v1299
        %vm1306 = vmor %vm1304, %vm1305
        %v1307 = vsel %vm1306, %v1299, %v1303
        %v1308 = vand.u32 2147483647, %v1298
        %vm1309 = vcmp.eq.f32.partialorder %v1308, 8.507059e+37
        %v1310 = vand.u32 %v1298, 2147483648
        %v1311 = vor.u32 1.1754944e-38, %v1310
        %v1312 = vsel %vm1309, %v1311, %v1307
        %v1313 = vmul.f32 1.0, %v1312
        %v1314 = vtanh.pop %v1274
        %v1315 = vxor.u32 %v1275, 2147483648
        %v1316 = vmul.f32 %v1315, 1.442695
        %v1317 = vpow.pop %v1316
        %v1318 = vadd.f32 %v1317, 1.0
        %v1319 = vrcp.pop %v1318
        %v1320 = vmul.f32 %v1318, %v1319
        %v1321 = vsub.f32 1.0, %v1320
        %v1322 = vmul.f32 %v1319, %v1321
        %v1323 = vadd.f32 %v1319, %v1322
        %vm1324 = vweird.f32 %v1318
        %vm1325 = vweird.f32 %v1319
        %vm1326 = vmor %vm1324, %vm1325
        %v1327 = vsel %vm1326, %v1319, %v1323
        %v1328 = vand.u32 2147483647, %v1318
        %vm1329 = vcmp.eq.f32.partialorder %v1328, 8.507059e+37
        %v1330 = vand.u32 %v1318, 2147483648
        %v1331 = vor.u32 1.1754944e-38, %v1330
        %v1332 = vsel %vm1329, %v1331, %v1327
        %v1333 = vmul.f32 1.0, %v1332
        %v1334 = vmul.f32 %v1313, %v1116
        %v1335 = vmul.f32 %v1294, %v1314
        %v1336 = vadd.f32 %v1334, %v1335
        %v1337 = vtanh.pop %v1336
        %v1338 = vmul.f32 %v1333, %v1337
        %s1339 = scalar_lea.vmem [#allocation5], 24
        %1340 = vst [vmem:[%s1339] sm:$0xff] %v1338
        %1341 = vst [vmem:[#allocation2] sm:$0xff] %v1338
        %1342 = vst [vmem:[#allocation3] sm:$0xff] %v1336
        %v1343 = vld [vmem:[#allocation5] sm:$0xff]
        %v1344 = vld [vmem:[#allocation5 + $0x8] sm:$0xff]
        %v1345 = vld [vmem:[#allocation5 + $0x10] sm:$0xff]
        %v1346 = vld [vmem:[#allocation5 + $0x18] sm:$0xff]
        %v1347 = vld [vmem:[#allocation9] sm:$0xff]
        %v1348 = vld [vmem:[#allocation9 + $0x8] sm:$0xff]
        %v1349 = vld [vmem:[#allocation9 + $0x10] sm:$0xff]
        %v1350 = vld [vmem:[#allocation9 + $0x18] sm:$0xff]
        %v1351 = vld [vmem:[#allocation9 + $0x20] sm:$0xff]
        %v1352 = vld [vmem:[#allocation9 + $0x28] sm:$0xff]
        %v1353 = vld [vmem:[#allocation9 + $0x30] sm:$0xff]
        %v1354 = vld [vmem:[#allocation9 + $0x38] sm:$0xff]
        %v1355 = vld [vmem:[#allocation9 + $0x40] sm:$0xff]
        %v1356 = vld [vmem:[#allocation9 + $0x48] sm:$0xff]
        %v1357 = vld [vmem:[#allocation9 + $0x50] sm:$0xff]
        %v1358 = vld [vmem:[#allocation9 + $0x58] sm:$0xff]
        %v1359 = vld [vmem:[#allocation9 + $0x60] sm:$0xff]
        %v1360 = vld [vmem:[#allocation9 + $0x68] sm:$0xff]
        %v1361 = vld [vmem:[#allocation9 + $0x70] sm:$0xff]
        %v1362 = vld [vmem:[#allocation9 + $0x78] sm:$0xff]
        %v1363 = vld [vmem:[%s5] sm:$0x1]
        %v1365 = vperm.slane %v1363, 0
        %1367 = vmatpush.msra.mxu0 %v1362
        %1368 = vmatpush.msra.mxu0 %v1361
        %1369 = vmatpush.msra.mxu0 %v1360
        %1370 = vmatpush.msra.mxu0 %v1359
        %1371 = vmatpush.msra.mxu0 %v1358
        %1372 = vmatpush.msra.mxu0 %v1357
        %1373 = vmatpush.msra.mxu0 %v1356
        %1374 = vmatpush.msra.mxu0 %v1355
        %1375 = vmatpush.msra.mxu0 %v1354
        %1376 = vmatpush.msra.mxu0 %v1353
        %1377 = vmatpush.msra.mxu0 %v1352
        %1378 = vmatpush.msra.mxu0 %v1351
        %1379 = vmatpush.msra.mxu0 %v1350
        %1380 = vmatpush.msra.mxu0 %v1349
        %1381 = vmatpush.msra.mxu0 %v1348
        %1382 = vmatpush.msra.mxu0 %v1347
        %1383 = vmatmul.f32.gmra.mxu0 %v1343
        %v1384 = vpop.f32.mrf.mxu0
        %v1385 = vadd.f32 %v1365, %v1384
        %1386 = vmatmul.f32.gmra.mxu0 %v1344
        %v1387 = vpop.f32.mrf.mxu0
        %v1388 = vadd.f32 %v1365, %v1387
        %1389 = vmatmul.f32.gmra.mxu0 %v1345
        %v1390 = vpop.f32.mrf.mxu0
        %v1391 = vadd.f32 %v1365, %v1390
        %1392 = vmatmul.f32.gmra.mxu0 %v1346
        %v1393 = vpop.f32.mrf.mxu0
        %v1394 = vadd.f32 %v1365, %v1393
        %1395 = vdwg.mxu0
        %1396 = vst [vmem:[%s279] sm:$0xff] %v1385
        %1397 = vst [vmem:[%s279 + $0x8] sm:$0xff] %v1388
        %1398 = vst [vmem:[%s279 + $0x10] sm:$0xff] %v1391
        %1399 = vst [vmem:[%s279 + $0x18] sm:$0xff] %v1394
        %s1400 = sand.u32 %s161, 1
        %s1401 = scalar_lea.sflag [#allocation8], %s1400
        %s1402 = sand.u32 %s161, 1
        %s1403 = smul.addr %s1402, 32
        %s1404 = scalar_lea.vmem [#allocation11], %s1403
        // Predicated region
        $region57: #{tpu_custom_call.1} parent=43 // pred_check
          %p1405 = pneg %p171
        $region58: #{tpu_custom_call.1} parent=43 // pred_check_branch
          %1407 = sbr.rel (%p1405) target = $region60
        $region59: #{tpu_custom_call.1} parent=43 // pred_region
          %s1408 = smul.u32 4, %s22
          %1410 = vsyncadd %s1401, 0
          %s1411 = smul.addr %s1408, 8
          %s1412 = scalar_lea.hbm %s6, %s1411
          %s1413 = sshll.u32 %s1404, 4
          %s1414 = int_to_ptr.vmem [resolvable:$true] %s1413
          %s1415 = sshll.u32 %s1412, 4
          %s1416 = int_to_ptr.hbm [resolvable:$true] %s1415
          %1421 = dma.vmem_to_hbm [thread:$0]  %s1414, 512, %s1416, %s1401, 128, 128, 8
        $region60: #{tpu_custom_call.1} parent=43 // pred_fallthru
          _
      $region44: #{tpu_custom_call.1} parent=5 // pred_fallthru
        _
      %p1422 = scmp.le.s32.totalorder 2, %s17
      // Predicated region
      $region61: #{tpu_custom_call.1} parent=5 // pred_check
        %p1423 = pneg %p1422
      $region62: #{tpu_custom_call.1} parent=5 // pred_check_branch
        %1425 = sbr.rel (%p1423) target = $region64
      $region63: #{tpu_custom_call.1} parent=5 // pred_region
        %s1426 = ssub.s32 %s17, 2
        // Predicated region
        $region65: #{tpu_custom_call.1} parent=63 // pred_check
          %p1427 = pneg %p177
        $region66: #{tpu_custom_call.1} parent=63 // pred_check_branch
          %1429 = sbr.rel (%p1427) target = $region68
        $region67: #{tpu_custom_call.1} parent=63 // pred_region
          %s1430 = sand.u32 %s162, 1
          %s1431 = scalar_lea.sflag [#allocation8], %s1430
          %s1432 = sand.u32 %s162, 1
          %s1433 = smul.addr %s1432, 32
          %s1434 = scalar_lea.vmem [#allocation11], %s1433
          %1436 = dma.done %s1431, 512
        $region68: #{tpu_custom_call.1} parent=63 // pred_fallthru
          _
      $region64: #{tpu_custom_call.1} parent=5 // pred_fallthru
        _
    $region6: #{tpu_custom_call.1} parent=1 // loop_footer
      %s21 = sadd.s32 1, %s17
    $region7: #{tpu_custom_call.1} parent=1 // loop_footer_branch
      %16 = sbr.rel target = $region3
    $region8: #{tpu_custom_call.1} parent=1 // loop_exit
      _
    %1437 = vsyncpa [#allocation7], 1
    %s1438 = scalar_lea.sflag [#allocation7], 1
    %1439 = vsyncpa %s1438, 1
    %1440 = vsyncpa [#allocation10], 1
    %1441 = vsyncpa [#allocation8], 1
    %s1442 = scalar_lea.sflag [#allocation8], 1
    %1443 = vsyncpa %s1442, 1

</llo_original>
